<compile_context>
chip_gen: v5e
topology: v5e:2x2
jax: 0.10.0
libtpu: 0.0.40
codegen_flags: <defaults>
</compile_context>

<pallas_src>
import functools

import numpy as np
import jax
import jax.numpy as jnp
from jax import lax
from jax.experimental import pallas as pl
from jax.experimental.pallas import tpu as pltpu

LANE = 128
GATE_W = 4 * LANE          # padded LSTM gate row width: i|f|g|o, each H -> 128 lanes


def _rpad8(n):
    return ((n + 7) // 8) * 8


# ----------------------------------------------------------------------------
# One-time parameter packing: everything into a single (rows, 512) f32 buffer.
# ----------------------------------------------------------------------------
def prepare_params(params, hw):
    np_p = {k: np.asarray(v, dtype=np.float32) for k, v in params.items()}
    D_map, D_txt = np_p["W_word"].shape
    _, D_img = np_p["W_img"].shape
    D_ans = np_p["W_ans"].shape[0]
    H = np_p["W_hh"].shape[1]
    vocab = np_p["embedding"].shape[0]
    assert D_map == H, "elementwise mul in the module requires D_map == D_hidden"
    assert max(D_map, D_txt, D_ans, D_img) <= LANE

    vocab_pad = _rpad8(vocab)

    def spread_gates(x):            # (..., 4H) -> (..., 4*128): gate k -> lanes [k*128, k*128+H)
        out = np.zeros(x.shape[:-1] + (GATE_W,), np.float32)
        for k in range(4):
            out[..., k * LANE:k * LANE + H] = x[..., k * H:(k + 1) * H]
        return out

    sections, offsets, cursor = [], {}, 0

    def add(name, block):           # block: (rows, GATE_W); rows padded to mult of 8
        nonlocal cursor
        rows = _rpad8(block.shape[0])
        buf = np.zeros((rows, GATE_W), np.float32)
        buf[:block.shape[0]] = block
        offsets[name] = cursor
        sections.append(buf)
        cursor += rows

    def head(mat, rows=None):       # (r, c<=128) -> (rows, GATE_W), data in lanes [0, c)
        r, c = mat.shape
        rows = r if rows is None else rows
        buf = np.zeros((rows, GATE_W), np.float32)
        buf[:r, :c] = mat
        return buf

    # --- LSTM gate tensors (full 4*128 width) --------------------------------  [R2][R3]
    e_proj = np_p["embedding"] @ np_p["W_ih"].T                  # (vocab, 4H)
    add("e_proj", spread_gates(e_proj))
    w_hh = np.zeros((LANE, GATE_W), np.float32)                  # zero rows >= H
    w_hh[:H] = spread_gates(np_p["W_hh"].T)                      # (H, 4H) -> (128, 512)
    add("w_hh", w_hh)
    add("b_lstm", spread_gates((np_p["b_ih"] + np_p["b_hh"])[None, :]))

    # --- dense head tensors (lane-dense, lanes [0, 128)) ----------------------  [R1]
    add("w_word", head(np_p["W_word"].T))                        # (D_txt, D_map)
    add("b_word", head(np_p["b_word"][None, :]))
    add("w_img", head(np_p["W_img"].T))                          # general C_att>1 path
    add("b_img", head(np_p["b_img"][None, :]))
    add("w_ans", head(np_p["W_ans"].T, rows=LANE))               # (128, D_ans) zero-row padded
    add("b_ans", head(np_p["b_ans"][None, :]))

    # --- W_img_rep: spatial sum folded into the image projection --------------  [R5]
    # feat = img.reshape(N, D_img*hw) @ W_img_rep, with W_img_rep[d*hw + s] = W_img.T[d].
    # Stored split into g_img column blocks so the packed buffer stays lane-dense.
    k_tot = D_img * hw
    w_img_rep = np.zeros((k_tot, LANE), np.float32)
    w_img_rep[:, :D_map] = np.repeat(np_p["W_img"].T, hw, axis=0)
    g_img = 4 if k_tot % (4 * LANE) == 0 else 1
    k_chunk = k_tot // g_img
    rep_blk = np.zeros((k_chunk, GATE_W), np.float32)
    for g in range(g_img):
        rep_blk[:, g * LANE:(g + 1) * LANE] = w_img_rep[g * k_chunk:(g + 1) * k_chunk]
    add("w_img_rep", rep_blk)

    packed = jnp.asarray(np.concatenate(sections, axis=0))       # (rows, 512) f32, one DMA
    meta = dict(D_txt=D_txt, D_img=D_img, D_map=D_map, H=H, D_ans=D_ans,
                vocab=vocab, vocab_pad=vocab_pad, hw=hw,
                g_img=g_img, k_chunk=k_chunk, offsets=offsets)
    return packed, meta


# ----------------------------------------------------------------------------
# Fused kernel: attention pooling + one-hot embedding + LSTM + dense head.
# ----------------------------------------------------------------------------
def _make_describe_kernel(meta, use_att, T):
    off = meta["offsets"]
    D_txt, D_img = meta["D_txt"], meta["D_img"]
    vp = meta["vocab_pad"]
    g_img, k_chunk = meta["g_img"], meta["k_chunk"]

    def body(tok_ref, att_ref, img_ref, wv_ref, pk_ref, out_ref):
        f32 = jnp.float32

        # ---- image branch -> feat_mapped (N, 128) ---------------------------
        b_img = pk_ref[off["b_img"]:off["b_img"] + 1, 0:LANE]
        if att_ref is None:
            # Softmax over a single attention channel is identically 1, so the
            # pooling is a plain spatial sum, folded into the projection matmul
            # (real K dimension for the MXU, no cross-lane XLU reduce).   [R5]
            img2d = img_ref[...]                                   # (N, D_img*HW)
            acc = jnp.dot(img2d[:, 0:k_chunk],
                          pk_ref[off["w_img_rep"]:off["w_img_rep"] + k_chunk, 0:LANE],
                          preferred_element_type=f32)
            for g in range(1, g_img):
                acc = acc + jnp.dot(
                    img2d[:, g * k_chunk:(g + 1) * k_chunk],
                    pk_ref[off["w_img_rep"]:off["w_img_rep"] + k_chunk,
                           g * LANE:(g + 1) * LANE],
                    preferred_element_type=f32)
            feat_mapped = acc + b_img
        else:
            # General Softmax2d path (wrapper guarantees C_att == D_img).
            att = att_ref[...]
            m = jnp.max(att, axis=1, keepdims=True)
            e = jnp.exp(att - m)
            p = e / jnp.sum(e, axis=1, keepdims=True)
            pooled = jnp.sum(p * img_ref[...], axis=2)             # (N, D_img)
            w_img = pk_ref[off["w_img"]:off["w_img"] + D_img, 0:LANE]
            feat_mapped = jnp.dot(pooled, w_img,
                                  preferred_element_type=f32) + b_img

        # ---- word branch -> wordvec_mapped (1, 128) --------------------------
        w_word = pk_ref[off["w_word"]:off["w_word"] + D_txt, 0:LANE]
        b_word = pk_ref[off["b_word"]:off["b_word"] + 1, 0:LANE]
        wv_mapped = jnp.dot(wv_ref[...], w_word,
                            preferred_element_type=f32) + b_word

        # ---- LSTM encoder: one-hot matmul against E_proj = embedding @ W_ih^T  [R2]
        onehot = (tok_ref[...] ==
                  lax.broadcasted_iota(jnp.int32, (T, vp), 1)).astype(f32)
        e_proj = pk_ref[off["e_proj"]:off["e_proj"] + vp, :]       # (vp, 512)
        b_lstm = pk_ref[off["b_lstm"]:off["b_lstm"] + 1, :]        # (1, 512)
        gates_x = jnp.dot(onehot, e_proj,
                          preferred_element_type=f32) + b_lstm     # (T, 512)

        w_hh = pk_ref[off["w_hh"]:off["w_hh"] + LANE, :]           # (128, 512)
        h = jnp.zeros((1, LANE), f32)                              # padded lanes stay 0
        c = jnp.zeros((1, LANE), f32)
        for t in range(T):   # fully unrolled; per-step chain: MXU -> 2 EUP -> VPU
            gates = gates_x[t:t + 1, :] + jnp.dot(h, w_hh,
                                                  preferred_element_type=f32)
            sig = jax.nn.sigmoid(gates)        # one launch covers i, f, o   [R4]
            tnh = jnp.tanh(gates)              # one launch covers g
            i_g = sig[:, 0 * LANE:1 * LANE]    # vreg-aligned gate slices    [R3]
            f_g = sig[:, 1 * LANE:2 * LANE]
            g_g = tnh[:, 2 * LANE:3 * LANE]
            o_g = sig[:, 3 * LANE:4 * LANE]
            c = f_g * c + i_g * g_g
            h = o_g * jnp.tanh(c)              # (1, 128) last hidden state

        # ---- combine, L2-normalize, answer head ------------------------------
        em = feat_mapped * wv_mapped * h                           # padded lanes are 0
        sumsq = jnp.sum(em * em, axis=1, keepdims=True)
        em = em * lax.rsqrt(jnp.maximum(sumsq, 1e-24))             # == x / max(||x||, 1e-12)
        w_ans = pk_ref[off["w_ans"]:off["w_ans"] + LANE, 0:LANE]
        b_ans = pk_ref[off["b_ans"]:off["b_ans"] + 1, 0:LANE]
        out_ref[...] = jnp.dot(em, w_ans,
                               preferred_element_type=f32) + b_ans

    if use_att:
        def kernel(tok_ref, att_ref, img_ref, wv_ref, pk_ref, out_ref):
            body(tok_ref, att_ref, img_ref, wv_ref, pk_ref, out_ref)
    else:
        def kernel(tok_ref, img_ref, wv_ref, pk_ref, out_ref):
            body(tok_ref, None, img_ref, wv_ref, pk_ref, out_ref)
    return kernel


# ----------------------------------------------------------------------------
# Full DescribeModule forward: one fused pallas_call (4 input DMAs).
# ----------------------------------------------------------------------------
def describe_module_forward(packed, attention_grid, module_wordvec, image_feat,
                            token_sequence_tensor, *, meta):
    N, C_att, Hs, Ws = attention_grid.shape
    _, D_img, Hi, Wi = image_feat.shape
    HW = Hs * Ws
    assert (Hi, Wi) == (Hs, Ws) and HW == meta["hw"] and D_img == meta["D_img"]
    # Softmax2d output only broadcasts against image_feat when C_att == 1 or C_att == D_img.
    assert C_att == 1 or C_att == D_img, "C_att must be 1 or equal D_img"
    # The LSTM encoder consumes a single question, as in the reference (tokens[0]).
    assert token_sequence_tensor.shape[0] == 1
    T = token_sequence_tensor.shape[1]

    # Wrapper-side ops are no-op astypes / contiguous reshapes only.        [R8]
    tokens = token_sequence_tensor[0].reshape(T, 1).astype(jnp.int32)
    wv = module_wordvec.astype(jnp.float32)

    vmem = pl.BlockSpec(memory_space=pltpu.MemorySpace.VMEM)
    use_att = C_att > 1
    if use_att:
        att = attention_grid.reshape(N, C_att, HW).astype(jnp.float32)
        img = image_feat.reshape(N, D_img, HW).astype(jnp.float32)
        args = (tokens, att, img, wv, packed)
    else:
        img = image_feat.reshape(N, D_img * HW).astype(jnp.float32)
        args = (tokens, img, wv, packed)

    kernel = _make_describe_kernel(meta, use_att, T)
    # TODO(synk): for large N on v7x add grid=(cdiv(N, tile_n),) with
    # dimension_semantics=("parallel",) to shard the batch over both TensorCores;
    # at N=2 per-grid-step overhead exceeds the win, so stay single-shot.     [R6]
    scores_padded = pl.pallas_call(
        kernel,
        out_shape=jax.ShapeDtypeStruct((N, LANE), jnp.float32),   # lane-dense output
        in_specs=[vmem] * len(args),
        out_specs=vmem,
    )(*args)
    return scores_padded[:, :meta["D_ans"]]


# ----------------------------------------------------------------------------
# Pure-JAX reference (mirrors the PyTorch forward)
# ----------------------------------------------------------------------------
def reference_forward(params, attention_grid, module_wordvec, image_feat,
                      token_sequence_tensor):
    p = jax.nn.softmax(attention_grid, axis=1)                     # Softmax2d
    attended = p * image_feat
    ipv = attended.sum(axis=(2, 3))                                # (N, D_img)

    wv = module_wordvec @ params["W_word"].T + params["b_word"]    # (1, D_map)
    fm = ipv @ params["W_img"].T + params["b_img"]                 # (N, D_map)
    em = fm * wv

    embeds = params["embedding"][token_sequence_tensor[0]]         # (T, D_txt)
    H = params["W_hh"].shape[1]
    h = jnp.zeros((1, H), jnp.float32)
    c = jnp.zeros((1, H), jnp.float32)
    for t in range(embeds.shape[0]):
        gates = (embeds[t:t + 1] @ params["W_ih"].T + params["b_ih"]
                 + h @ params["W_hh"].T + params["b_hh"])
        i = jax.nn.sigmoid(gates[:, 0 * H:1 * H])
        f = jax.nn.sigmoid(gates[:, 1 * H:2 * H])
        g = jnp.tanh(gates[:, 2 * H:3 * H])
        o = jax.nn.sigmoid(gates[:, 3 * H:4 * H])
        c = f * c + i * g
        h = o * jnp.tanh(c)

    em = em * h
    norm = jnp.maximum(jnp.sqrt(jnp.sum(em * em, axis=1, keepdims=True)), 1e-12)
    em = em / norm
    return em @ params["W_ans"].T + params["b_ans"]


# ----------------------------------------------------------------------------
# Deterministic parameter init (shapes from DescribeModule.__init__)
# ----------------------------------------------------------------------------
def init_params(key, D_txt, D_img, D_map, D_hidden, vocab_size, D_ans):
    ks = jax.random.split(key, 12)

    def lin_w(k, out_d, in_d):
        bound = 1.0 / np.sqrt(in_d)
        return jax.random.uniform(k, (out_d, in_d), jnp.float32, -bound, bound)

    def lin_b(k, out_d, in_d):
        bound = 1.0 / np.sqrt(in_d)
        return jax.random.uniform(k, (out_d,), jnp.float32, -bound, bound)

    return {
        "W_word": lin_w(ks[0], D_map, D_txt), "b_word": lin_b(ks[1], D_map, D_txt),
        "W_img": lin_w(ks[2], D_map, D_img), "b_img": lin_b(ks[3], D_map, D_img),
        "W_ans": lin_w(ks[4], D_ans, D_map), "b_ans": lin_b(ks[5], D_ans, D_map),
        "embedding": 0.1 * jax.random.normal(ks[6], (vocab_size, D_txt), jnp.float32),
        "W_ih": lin_w(ks[7], 4 * D_hidden, D_txt),
        "W_hh": lin_w(ks[8], 4 * D_hidden, D_hidden),
        "b_ih": lin_b(ks[9], 4 * D_hidden, D_hidden),
        "b_hh": lin_b(ks[10], 4 * D_hidden, D_hidden),
    }


if __name__ == "__main__":
    # Small shapes consistent with the module.
    N, C_att, Hs, Ws = 2, 1, 16, 16
    D_txt, D_img, D_map, D_hidden = 32, 4, 32, 32   # D_map == D_hidden required by the module's mul
    vocab_size, D_ans, T = 20, 16, 8

    key = jax.random.PRNGKey(0)
    k_par, k_att, k_img, k_wv, k_tok = jax.random.split(key, 5)

    params = init_params(k_par, D_txt, D_img, D_map, D_hidden, vocab_size, D_ans)

    attention_grid = jax.random.normal(k_att, (N, C_att, Hs, Ws), jnp.float32)
    image_feat = jax.random.normal(k_img, (N, D_img, Hs, Ws), jnp.float32)
    module_wordvec = jax.random.normal(k_wv, (1, D_txt), jnp.float32)
    token_sequence_tensor = jax.random.randint(k_tok, (1, T), 0, vocab_size, jnp.int32)

    packed, meta = prepare_params(params, hw=Hs * Ws)          # one-time layout prep
    fwd = jax.jit(functools.partial(describe_module_forward, meta=meta))

    scores = fwd(packed, attention_grid, module_wordvec, image_feat,
                 token_sequence_tensor)
    scores = jax.block_until_ready(scores)

    ref = reference_forward(params, attention_grid, module_wordvec,
                            image_feat, token_sequence_tensor)
    np.testing.assert_allclose(np.asarray(scores), np.asarray(ref),
                               rtol=1e-4, atol=1e-4)

    print("KERNEL_OK")
</pallas_src>

<mosaic_0001>
module attributes {stable_mosaic.version = 11 : i64} {
  func.func @kernel(%arg0: memref<8x1xi32, #tpu.memory_space<vmem>>, %arg1: memref<2x1024xf32, #tpu.memory_space<vmem>>, %arg2: memref<1x32xf32, #tpu.memory_space<vmem>>, %arg3: memref<608x512xf32, #tpu.memory_space<vmem>>, %arg4: memref<2x128xf32, #tpu.memory_space<vmem>>) attributes {dimension_semantics = [], scalar_prefetch = 0 : i64, scratch_operands = 0 : i64, tpu.core_type = #tpu.core_type<tc>} {
    %c208 = arith.constant 208 : index
    %c0 = arith.constant 0 : index
    %0 = vector.load %arg3[%c208, %c0] : memref<608x512xf32, #tpu.memory_space<vmem>>, vector<1x128xf32>
    %c0_0 = arith.constant 0 : index
    %c0_1 = arith.constant 0 : index
    %1 = vector.load %arg1[%c0_0, %c0_1] : memref<2x1024xf32, #tpu.memory_space<vmem>>, vector<2x1024xf32>
    %2 = vector.extract_strided_slice %1 {offsets = [0, 0], sizes = [2, 256], strides = [1, 1]} : vector<2x1024xf32> to vector<2x256xf32>
    %c352 = arith.constant 352 : index
    %c0_2 = arith.constant 0 : index
    %3 = vector.load %arg3[%c352, %c0_2] : memref<608x512xf32, #tpu.memory_space<vmem>>, vector<256x128xf32>
    %cst = arith.constant dense<0.000000e+00> : vector<2x128xf32>
    %4 = tpu.matmul %2, %3, %cst {dimension_numbers = #tpu.dot_dimension_numbers<[1], [0], [0], [1], [0, 0, 1, 1], [], []>} : vector<2x256xf32>, vector<256x128xf32>, vector<2x128xf32> -> vector<2x128xf32>
    %5 = vector.extract_strided_slice %1 {offsets = [0, 256], sizes = [2, 256], strides = [1, 1]} : vector<2x1024xf32> to vector<2x256xf32>
    %c352_3 = arith.constant 352 : index
    %c128 = arith.constant 128 : index
    %6 = vector.load %arg3[%c352_3, %c128] : memref<608x512xf32, #tpu.memory_space<vmem>>, vector<256x128xf32>
    %cst_4 = arith.constant dense<0.000000e+00> : vector<2x128xf32>
    %7 = tpu.matmul %5, %6, %cst_4 {dimension_numbers = #tpu.dot_dimension_numbers<[1], [0], [0], [1], [0, 0, 1, 1], [], []>} : vector<2x256xf32>, vector<256x128xf32>, vector<2x128xf32> -> vector<2x128xf32>
    %8 = arith.addf %4, %7 : vector<2x128xf32>
    %9 = vector.extract_strided_slice %1 {offsets = [0, 512], sizes = [2, 256], strides = [1, 1]} : vector<2x1024xf32> to vector<2x256xf32>
    %c352_5 = arith.constant 352 : index
    %c256 = arith.constant 256 : index
    %10 = vector.load %arg3[%c352_5, %c256] : memref<608x512xf32, #tpu.memory_space<vmem>>, vector<256x128xf32>
    %cst_6 = arith.constant dense<0.000000e+00> : vector<2x128xf32>
    %11 = tpu.matmul %9, %10, %cst_6 {dimension_numbers = #tpu.dot_dimension_numbers<[1], [0], [0], [1], [0, 0, 1, 1], [], []>} : vector<2x256xf32>, vector<256x128xf32>, vector<2x128xf32> -> vector<2x128xf32>
    %12 = arith.addf %8, %11 : vector<2x128xf32>
    %13 = vector.extract_strided_slice %1 {offsets = [0, 768], sizes = [2, 256], strides = [1, 1]} : vector<2x1024xf32> to vector<2x256xf32>
    %c352_7 = arith.constant 352 : index
    %c384 = arith.constant 384 : index
    %14 = vector.load %arg3[%c352_7, %c384] : memref<608x512xf32, #tpu.memory_space<vmem>>, vector<256x128xf32>
    %cst_8 = arith.constant dense<0.000000e+00> : vector<2x128xf32>
    %15 = tpu.matmul %13, %14, %cst_8 {dimension_numbers = #tpu.dot_dimension_numbers<[1], [0], [0], [1], [0, 0, 1, 1], [], []>} : vector<2x256xf32>, vector<256x128xf32>, vector<2x128xf32> -> vector<2x128xf32>
    %16 = arith.addf %12, %15 : vector<2x128xf32>
    %17 = vector.broadcast %0 : vector<1x128xf32> to vector<2x128xf32>
    %18 = arith.addf %16, %17 : vector<2x128xf32>
    %c160 = arith.constant 160 : index
    %c0_9 = arith.constant 0 : index
    %19 = vector.load %arg3[%c160, %c0_9] : memref<608x512xf32, #tpu.memory_space<vmem>>, vector<32x128xf32>
    %c192 = arith.constant 192 : index
    %c0_10 = arith.constant 0 : index
    %20 = vector.load %arg3[%c192, %c0_10] : memref<608x512xf32, #tpu.memory_space<vmem>>, vector<1x128xf32>
    %c0_11 = arith.constant 0 : index
    %c0_12 = arith.constant 0 : index
    %21 = vector.load %arg2[%c0_11, %c0_12] : memref<1x32xf32, #tpu.memory_space<vmem>>, vector<1x32xf32>
    %cst_13 = arith.constant dense<0.000000e+00> : vector<1x128xf32>
    %22 = tpu.matmul %21, %19, %cst_13 {dimension_numbers = #tpu.dot_dimension_numbers<[1], [0], [0], [1], [0, 0, 1, 1], [], []>} : vector<1x32xf32>, vector<32x128xf32>, vector<1x128xf32> -> vector<1x128xf32>
    %23 = arith.addf %22, %20 : vector<1x128xf32>
    %c0_14 = arith.constant 0 : index
    %c0_15 = arith.constant 0 : index
    %24 = vector.load %arg0[%c0_14, %c0_15] : memref<8x1xi32, #tpu.memory_space<vmem>>, vector<8x1xi32>
    %25 = tpu.iota {dimensions = array<i32: 1>} : vector<8x24xi32>
    %26 = vector.broadcast %24 : vector<8x1xi32> to vector<8x24xi32>
    %27 = arith.cmpi eq, %26, %25 : vector<8x24xi32>
    %28 = arith.extui %27 : vector<8x24xi1> to vector<8x24xi32>
    %29 = arith.sitofp %28 : vector<8x24xi32> to vector<8x24xf32>
    %c0_16 = arith.constant 0 : index
    %c0_17 = arith.constant 0 : index
    %30 = vector.load %arg3[%c0_16, %c0_17] : memref<608x512xf32, #tpu.memory_space<vmem>>, vector<24x512xf32>
    %c152 = arith.constant 152 : index
    %c0_18 = arith.constant 0 : index
    %31 = vector.load %arg3[%c152, %c0_18] : memref<608x512xf32, #tpu.memory_space<vmem>>, vector<1x512xf32>
    %cst_19 = arith.constant dense<0.000000e+00> : vector<8x512xf32>
    %32 = tpu.matmul %29, %30, %cst_19 {dimension_numbers = #tpu.dot_dimension_numbers<[1], [0], [0], [1], [0, 0, 1, 1], [], []>} : vector<8x24xf32>, vector<24x512xf32>, vector<8x512xf32> -> vector<8x512xf32>
    %33 = vector.broadcast %31 : vector<1x512xf32> to vector<8x512xf32>
    %34 = arith.addf %32, %33 : vector<8x512xf32>
    %c24 = arith.constant 24 : index
    %c0_20 = arith.constant 0 : index
    %35 = vector.load %arg3[%c24, %c0_20] : memref<608x512xf32, #tpu.memory_space<vmem>>, vector<128x512xf32>
    %cst_21 = arith.constant 0.000000e+00 : f32
    %36 = vector.broadcast %cst_21 : f32 to vector<1x128xf32>
    %cst_22 = arith.constant 0.000000e+00 : f32
    %37 = vector.broadcast %cst_22 : f32 to vector<1x128xf32>
    %38 = vector.extract_strided_slice %34 {offsets = [0, 0], sizes = [1, 512], strides = [1, 1]} : vector<8x512xf32> to vector<1x512xf32>
    %cst_23 = arith.constant dense<0.000000e+00> : vector<1x512xf32>
    %39 = tpu.matmul %36, %35, %cst_23 {dimension_numbers = #tpu.dot_dimension_numbers<[1], [0], [0], [1], [0, 0, 1, 1], [], []>} : vector<1x128xf32>, vector<128x512xf32>, vector<1x512xf32> -> vector<1x512xf32>
    %40 = arith.addf %38, %39 : vector<1x512xf32>
    %41 = arith.negf %40 : vector<1x512xf32>
    %42 = math.exp %41 : vector<1x512xf32>
    %cst_24 = arith.constant 1.000000e+00 : f32
    %43 = vector.broadcast %cst_24 : f32 to vector<1x512xf32>
    %44 = arith.addf %43, %42 : vector<1x512xf32>
    %45 = arith.divf %43, %44 : vector<1x512xf32>
    %46 = math.tanh %40 : vector<1x512xf32>
    %47 = vector.extract_strided_slice %45 {offsets = [0, 0], sizes = [1, 128], strides = [1, 1]} : vector<1x512xf32> to vector<1x128xf32>
    %48 = vector.extract_strided_slice %45 {offsets = [0, 128], sizes = [1, 128], strides = [1, 1]} : vector<1x512xf32> to vector<1x128xf32>
    %49 = vector.extract_strided_slice %46 {offsets = [0, 256], sizes = [1, 128], strides = [1, 1]} : vector<1x512xf32> to vector<1x128xf32>
    %50 = vector.extract_strided_slice %45 {offsets = [0, 384], sizes = [1, 128], strides = [1, 1]} : vector<1x512xf32> to vector<1x128xf32>
    %51 = arith.mulf %48, %37 : vector<1x128xf32>
    %52 = arith.mulf %47, %49 : vector<1x128xf32>
    %53 = arith.addf %51, %52 : vector<1x128xf32>
    %54 = math.tanh %53 : vector<1x128xf32>
    %55 = arith.mulf %50, %54 : vector<1x128xf32>
    %56 = vector.extract_strided_slice %34 {offsets = [1, 0], sizes = [1, 512], strides = [1, 1]} : vector<8x512xf32> to vector<1x512xf32>
    %cst_25 = arith.constant dense<0.000000e+00> : vector<1x512xf32>
    %57 = tpu.matmul %55, %35, %cst_25 {dimension_numbers = #tpu.dot_dimension_numbers<[1], [0], [0], [1], [0, 0, 1, 1], [], []>} : vector<1x128xf32>, vector<128x512xf32>, vector<1x512xf32> -> vector<1x512xf32>
    %58 = arith.addf %56, %57 : vector<1x512xf32>
    %59 = arith.negf %58 : vector<1x512xf32>
    %60 = math.exp %59 : vector<1x512xf32>
    %cst_26 = arith.constant 1.000000e+00 : f32
    %61 = vector.broadcast %cst_26 : f32 to vector<1x512xf32>
    %62 = arith.addf %61, %60 : vector<1x512xf32>
    %63 = arith.divf %61, %62 : vector<1x512xf32>
    %64 = math.tanh %58 : vector<1x512xf32>
    %65 = vector.extract_strided_slice %63 {offsets = [0, 0], sizes = [1, 128], strides = [1, 1]} : vector<1x512xf32> to vector<1x128xf32>
    %66 = vector.extract_strided_slice %63 {offsets = [0, 128], sizes = [1, 128], strides = [1, 1]} : vector<1x512xf32> to vector<1x128xf32>
    %67 = vector.extract_strided_slice %64 {offsets = [0, 256], sizes = [1, 128], strides = [1, 1]} : vector<1x512xf32> to vector<1x128xf32>
    %68 = vector.extract_strided_slice %63 {offsets = [0, 384], sizes = [1, 128], strides = [1, 1]} : vector<1x512xf32> to vector<1x128xf32>
    %69 = arith.mulf %66, %53 : vector<1x128xf32>
    %70 = arith.mulf %65, %67 : vector<1x128xf32>
    %71 = arith.addf %69, %70 : vector<1x128xf32>
    %72 = math.tanh %71 : vector<1x128xf32>
    %73 = arith.mulf %68, %72 : vector<1x128xf32>
    %74 = vector.extract_strided_slice %34 {offsets = [2, 0], sizes = [1, 512], strides = [1, 1]} : vector<8x512xf32> to vector<1x512xf32>
    %cst_27 = arith.constant dense<0.000000e+00> : vector<1x512xf32>
    %75 = tpu.matmul %73, %35, %cst_27 {dimension_numbers = #tpu.dot_dimension_numbers<[1], [0], [0], [1], [0, 0, 1, 1], [], []>} : vector<1x128xf32>, vector<128x512xf32>, vector<1x512xf32> -> vector<1x512xf32>
    %76 = arith.addf %74, %75 : vector<1x512xf32>
    %77 = arith.negf %76 : vector<1x512xf32>
    %78 = math.exp %77 : vector<1x512xf32>
    %cst_28 = arith.constant 1.000000e+00 : f32
    %79 = vector.broadcast %cst_28 : f32 to vector<1x512xf32>
    %80 = arith.addf %79, %78 : vector<1x512xf32>
    %81 = arith.divf %79, %80 : vector<1x512xf32>
    %82 = math.tanh %76 : vector<1x512xf32>
    %83 = vector.extract_strided_slice %81 {offsets = [0, 0], sizes = [1, 128], strides = [1, 1]} : vector<1x512xf32> to vector<1x128xf32>
    %84 = vector.extract_strided_slice %81 {offsets = [0, 128], sizes = [1, 128], strides = [1, 1]} : vector<1x512xf32> to vector<1x128xf32>
    %85 = vector.extract_strided_slice %82 {offsets = [0, 256], sizes = [1, 128], strides = [1, 1]} : vector<1x512xf32> to vector<1x128xf32>
    %86 = vector.extract_strided_slice %81 {offsets = [0, 384], sizes = [1, 128], strides = [1, 1]} : vector<1x512xf32> to vector<1x128xf32>
    %87 = arith.mulf %84, %71 : vector<1x128xf32>
    %88 = arith.mulf %83, %85 : vector<1x128xf32>
    %89 = arith.addf %87, %88 : vector<1x128xf32>
    %90 = math.tanh %89 : vector<1x128xf32>
    %91 = arith.mulf %86, %90 : vector<1x128xf32>
    %92 = vector.extract_strided_slice %34 {offsets = [3, 0], sizes = [1, 512], strides = [1, 1]} : vector<8x512xf32> to vector<1x512xf32>
    %cst_29 = arith.constant dense<0.000000e+00> : vector<1x512xf32>
    %93 = tpu.matmul %91, %35, %cst_29 {dimension_numbers = #tpu.dot_dimension_numbers<[1], [0], [0], [1], [0, 0, 1, 1], [], []>} : vector<1x128xf32>, vector<128x512xf32>, vector<1x512xf32> -> vector<1x512xf32>
    %94 = arith.addf %92, %93 : vector<1x512xf32>
    %95 = arith.negf %94 : vector<1x512xf32>
    %96 = math.exp %95 : vector<1x512xf32>
    %cst_30 = arith.constant 1.000000e+00 : f32
    %97 = vector.broadcast %cst_30 : f32 to vector<1x512xf32>
    %98 = arith.addf %97, %96 : vector<1x512xf32>
    %99 = arith.divf %97, %98 : vector<1x512xf32>
    %100 = math.tanh %94 : vector<1x512xf32>
    %101 = vector.extract_strided_slice %99 {offsets = [0, 0], sizes = [1, 128], strides = [1, 1]} : vector<1x512xf32> to vector<1x128xf32>
    %102 = vector.extract_strided_slice %99 {offsets = [0, 128], sizes = [1, 128], strides = [1, 1]} : vector<1x512xf32> to vector<1x128xf32>
    %103 = vector.extract_strided_slice %100 {offsets = [0, 256], sizes = [1, 128], strides = [1, 1]} : vector<1x512xf32> to vector<1x128xf32>
    %104 = vector.extract_strided_slice %99 {offsets = [0, 384], sizes = [1, 128], strides = [1, 1]} : vector<1x512xf32> to vector<1x128xf32>
    %105 = arith.mulf %102, %89 : vector<1x128xf32>
    %106 = arith.mulf %101, %103 : vector<1x128xf32>
    %107 = arith.addf %105, %106 : vector<1x128xf32>
    %108 = math.tanh %107 : vector<1x128xf32>
    %109 = arith.mulf %104, %108 : vector<1x128xf32>
    %110 = vector.extract_strided_slice %34 {offsets = [4, 0], sizes = [1, 512], strides = [1, 1]} : vector<8x512xf32> to vector<1x512xf32>
    %cst_31 = arith.constant dense<0.000000e+00> : vector<1x512xf32>
    %111 = tpu.matmul %109, %35, %cst_31 {dimension_numbers = #tpu.dot_dimension_numbers<[1], [0], [0], [1], [0, 0, 1, 1], [], []>} : vector<1x128xf32>, vector<128x512xf32>, vector<1x512xf32> -> vector<1x512xf32>
    %112 = arith.addf %110, %111 : vector<1x512xf32>
    %113 = arith.negf %112 : vector<1x512xf32>
    %114 = math.exp %113 : vector<1x512xf32>
    %cst_32 = arith.constant 1.000000e+00 : f32
    %115 = vector.broadcast %cst_32 : f32 to vector<1x512xf32>
    %116 = arith.addf %115, %114 : vector<1x512xf32>
    %117 = arith.divf %115, %116 : vector<1x512xf32>
    %118 = math.tanh %112 : vector<1x512xf32>
    %119 = vector.extract_strided_slice %117 {offsets = [0, 0], sizes = [1, 128], strides = [1, 1]} : vector<1x512xf32> to vector<1x128xf32>
    %120 = vector.extract_strided_slice %117 {offsets = [0, 128], sizes = [1, 128], strides = [1, 1]} : vector<1x512xf32> to vector<1x128xf32>
    %121 = vector.extract_strided_slice %118 {offsets = [0, 256], sizes = [1, 128], strides = [1, 1]} : vector<1x512xf32> to vector<1x128xf32>
    %122 = vector.extract_strided_slice %117 {offsets = [0, 384], sizes = [1, 128], strides = [1, 1]} : vector<1x512xf32> to vector<1x128xf32>
    %123 = arith.mulf %120, %107 : vector<1x128xf32>
    %124 = arith.mulf %119, %121 : vector<1x128xf32>
    %125 = arith.addf %123, %124 : vector<1x128xf32>
    %126 = math.tanh %125 : vector<1x128xf32>
    %127 = arith.mulf %122, %126 : vector<1x128xf32>
    %128 = vector.extract_strided_slice %34 {offsets = [5, 0], sizes = [1, 512], strides = [1, 1]} : vector<8x512xf32> to vector<1x512xf32>
    %cst_33 = arith.constant dense<0.000000e+00> : vector<1x512xf32>
    %129 = tpu.matmul %127, %35, %cst_33 {dimension_numbers = #tpu.dot_dimension_numbers<[1], [0], [0], [1], [0, 0, 1, 1], [], []>} : vector<1x128xf32>, vector<128x512xf32>, vector<1x512xf32> -> vector<1x512xf32>
    %130 = arith.addf %128, %129 : vector<1x512xf32>
    %131 = arith.negf %130 : vector<1x512xf32>
    %132 = math.exp %131 : vector<1x512xf32>
    %cst_34 = arith.constant 1.000000e+00 : f32
    %133 = vector.broadcast %cst_34 : f32 to vector<1x512xf32>
    %134 = arith.addf %133, %132 : vector<1x512xf32>
    %135 = arith.divf %133, %134 : vector<1x512xf32>
    %136 = math.tanh %130 : vector<1x512xf32>
    %137 = vector.extract_strided_slice %135 {offsets = [0, 0], sizes = [1, 128], strides = [1, 1]} : vector<1x512xf32> to vector<1x128xf32>
    %138 = vector.extract_strided_slice %135 {offsets = [0, 128], sizes = [1, 128], strides = [1, 1]} : vector<1x512xf32> to vector<1x128xf32>
    %139 = vector.extract_strided_slice %136 {offsets = [0, 256], sizes = [1, 128], strides = [1, 1]} : vector<1x512xf32> to vector<1x128xf32>
    %140 = vector.extract_strided_slice %135 {offsets = [0, 384], sizes = [1, 128], strides = [1, 1]} : vector<1x512xf32> to vector<1x128xf32>
    %141 = arith.mulf %138, %125 : vector<1x128xf32>
    %142 = arith.mulf %137, %139 : vector<1x128xf32>
    %143 = arith.addf %141, %142 : vector<1x128xf32>
    %144 = math.tanh %143 : vector<1x128xf32>
    %145 = arith.mulf %140, %144 : vector<1x128xf32>
    %146 = vector.extract_strided_slice %34 {offsets = [6, 0], sizes = [1, 512], strides = [1, 1]} : vector<8x512xf32> to vector<1x512xf32>
    %cst_35 = arith.constant dense<0.000000e+00> : vector<1x512xf32>
    %147 = tpu.matmul %145, %35, %cst_35 {dimension_numbers = #tpu.dot_dimension_numbers<[1], [0], [0], [1], [0, 0, 1, 1], [], []>} : vector<1x128xf32>, vector<128x512xf32>, vector<1x512xf32> -> vector<1x512xf32>
    %148 = arith.addf %146, %147 : vector<1x512xf32>
    %149 = arith.negf %148 : vector<1x512xf32>
    %150 = math.exp %149 : vector<1x512xf32>
    %cst_36 = arith.constant 1.000000e+00 : f32
    %151 = vector.broadcast %cst_36 : f32 to vector<1x512xf32>
    %152 = arith.addf %151, %150 : vector<1x512xf32>
    %153 = arith.divf %151, %152 : vector<1x512xf32>
    %154 = math.tanh %148 : vector<1x512xf32>
    %155 = vector.extract_strided_slice %153 {offsets = [0, 0], sizes = [1, 128], strides = [1, 1]} : vector<1x512xf32> to vector<1x128xf32>
    %156 = vector.extract_strided_slice %153 {offsets = [0, 128], sizes = [1, 128], strides = [1, 1]} : vector<1x512xf32> to vector<1x128xf32>
    %157 = vector.extract_strided_slice %154 {offsets = [0, 256], sizes = [1, 128], strides = [1, 1]} : vector<1x512xf32> to vector<1x128xf32>
    %158 = vector.extract_strided_slice %153 {offsets = [0, 384], sizes = [1, 128], strides = [1, 1]} : vector<1x512xf32> to vector<1x128xf32>
    %159 = arith.mulf %156, %143 : vector<1x128xf32>
    %160 = arith.mulf %155, %157 : vector<1x128xf32>
    %161 = arith.addf %159, %160 : vector<1x128xf32>
    %162 = math.tanh %161 : vector<1x128xf32>
    %163 = arith.mulf %158, %162 : vector<1x128xf32>
    %164 = vector.extract_strided_slice %34 {offsets = [7, 0], sizes = [1, 512], strides = [1, 1]} : vector<8x512xf32> to vector<1x512xf32>
    %cst_37 = arith.constant dense<0.000000e+00> : vector<1x512xf32>
    %165 = tpu.matmul %163, %35, %cst_37 {dimension_numbers = #tpu.dot_dimension_numbers<[1], [0], [0], [1], [0, 0, 1, 1], [], []>} : vector<1x128xf32>, vector<128x512xf32>, vector<1x512xf32> -> vector<1x512xf32>
    %166 = arith.addf %164, %165 : vector<1x512xf32>
    %167 = arith.negf %166 : vector<1x512xf32>
    %168 = math.exp %167 : vector<1x512xf32>
    %cst_38 = arith.constant 1.000000e+00 : f32
    %169 = vector.broadcast %cst_38 : f32 to vector<1x512xf32>
    %170 = arith.addf %169, %168 : vector<1x512xf32>
    %171 = arith.divf %169, %170 : vector<1x512xf32>
    %172 = math.tanh %166 : vector<1x512xf32>
    %173 = vector.extract_strided_slice %171 {offsets = [0, 0], sizes = [1, 128], strides = [1, 1]} : vector<1x512xf32> to vector<1x128xf32>
    %174 = vector.extract_strided_slice %171 {offsets = [0, 128], sizes = [1, 128], strides = [1, 1]} : vector<1x512xf32> to vector<1x128xf32>
    %175 = vector.extract_strided_slice %172 {offsets = [0, 256], sizes = [1, 128], strides = [1, 1]} : vector<1x512xf32> to vector<1x128xf32>
    %176 = vector.extract_strided_slice %171 {offsets = [0, 384], sizes = [1, 128], strides = [1, 1]} : vector<1x512xf32> to vector<1x128xf32>
    %177 = arith.mulf %174, %161 : vector<1x128xf32>
    %178 = arith.mulf %173, %175 : vector<1x128xf32>
    %179 = arith.addf %177, %178 : vector<1x128xf32>
    %180 = math.tanh %179 : vector<1x128xf32>
    %181 = arith.mulf %176, %180 : vector<1x128xf32>
    %182 = vector.broadcast %23 : vector<1x128xf32> to vector<2x128xf32>
    %183 = arith.mulf %18, %182 : vector<2x128xf32>
    %184 = vector.broadcast %181 : vector<1x128xf32> to vector<2x128xf32>
    %185 = arith.mulf %183, %184 : vector<2x128xf32>
    %186 = arith.mulf %185, %185 : vector<2x128xf32>
    %cst_39 = arith.constant dense<0.000000e+00> : vector<2xf32>
    %187 = vector.multi_reduction <add>, %186, %cst_39 [1] : vector<2x128xf32> to vector<2xf32>
    %188 = vector.shape_cast %187 : vector<2xf32> to vector<2x1xf32>
    %cst_40 = arith.constant 1.000000e-24 : f32
    %189 = vector.broadcast %cst_40 : f32 to vector<2x1xf32>
    %190 = arith.maximumf %188, %189 : vector<2x1xf32>
    %191 = math.rsqrt %190 : vector<2x1xf32>
    %192 = vector.broadcast %191 : vector<2x1xf32> to vector<2x128xf32>
    %193 = arith.mulf %185, %192 : vector<2x128xf32>
    %c216 = arith.constant 216 : index
    %c0_41 = arith.constant 0 : index
    %194 = vector.load %arg3[%c216, %c0_41] : memref<608x512xf32, #tpu.memory_space<vmem>>, vector<128x128xf32>
    %c344 = arith.constant 344 : index
    %c0_42 = arith.constant 0 : index
    %195 = vector.load %arg3[%c344, %c0_42] : memref<608x512xf32, #tpu.memory_space<vmem>>, vector<1x128xf32>
    %cst_43 = arith.constant dense<0.000000e+00> : vector<2x128xf32>
    %196 = tpu.matmul %193, %194, %cst_43 {dimension_numbers = #tpu.dot_dimension_numbers<[1], [0], [0], [1], [0, 0, 1, 1], [], []>} : vector<2x128xf32>, vector<128x128xf32>, vector<2x128xf32> -> vector<2x128xf32>
    %197 = vector.broadcast %195 : vector<1x128xf32> to vector<2x128xf32>
    %198 = arith.addf %196, %197 : vector<2x128xf32>
    %c0_44 = arith.constant 0 : index
    %c0_45 = arith.constant 0 : index
    %199 = vector.load %arg4[%c0_44, %c0_45] : memref<2x128xf32, #tpu.memory_space<vmem>>, vector<2x128xf32>
    tpu.vector_store %arg4[%c0_44, %c0_45], %198 {strides = array<i32>} : memref<2x128xf32, #tpu.memory_space<vmem>>, vector<2x128xf32>,
    return
  }
}

</mosaic_0001>

<llo_original>
// kernel: describe_module_forward.1
$region0: #{describe_module_forward.1}
  #allocation0 [shape = 'u32[]', space=smem, size = 0x4, offset = 0x4, fixed_abs, tag = 'smem constant byte address 0x4 - core index']
  #allocation1 [shape = 'u32[72,128]{1,0:T(1,128)}', space=vmem, size = 0x9000, scoped, tag = 'internal scratch']
  %s0 = inlined_call_operand.vmem [shape: s32[8,1], index: 0, kind: input, shape index: {}]
  %s1 = inlined_call_operand.vmem [shape: f32[2,1024], index: 1, kind: input, shape index: {}]
  %s2 = inlined_call_operand.hbm [shape: f32[1,32], index: 2, kind: input, shape index: {}]
  %s3 = inlined_call_operand.hbm [shape: f32[608,512], index: 3, kind: input, shape index: {}]
  %s4 = inlined_call_operand.hbm [shape: f32[2,128], index: 4, kind: output, shape index: {}]
  %s5 = sld [smem:[#allocation0]]
  $region34: #{describe_module_forward.1} parent=0
    _
  %s7 = ssub.s32 1, %s5
  %s8 = scalar_select 0, %s7, %s5
  $region1: #{describe_module_forward.1} parent=0
    #allocation2 [shape = 'u8[512]{0}', space=vmem, size = 0x400, scoped, tag = 'input window, operand 2, single buffered']
    #allocation3 [shape = 's32[1]{0}', space=sflag, size = 0x4, scoped, tag = 'scoped memory for describe_module_forward.1']
    #allocation4 [shape = 's32[1]{0}', space=sflag, size = 0x4, scoped, tag = 'scoped memory for describe_module_forward.1']
    #allocation5 [shape = 'u8[1245184]{0}', space=vmem, size = 0x130000, scoped, tag = 'input window, operand 3, single buffered']
    #allocation6 [shape = 's32[1]{0}', space=sflag, size = 0x4, scoped, tag = 'scoped memory for describe_module_forward.1']
    #allocation7 [shape = 'u8[1024]{0}', space=vmem, size = 0x400, scoped, tag = 'output window, operand 0, single buffered']
    %9 = vsyncpa [#allocation3], 0
    %10 = vsyncpa [#allocation6], 0
    %11 = vsyncpa [#allocation4], 0
    // Predicated region
    $region2: #{describe_module_forward.1} parent=1 // pred_check
      _
    $region3: #{describe_module_forward.1} parent=1 // pred_check_branch
      %13 = sbr.rel (0) target = $region5
    $region4: #{describe_module_forward.1} parent=1 // pred_region
      _
    $region5: #{describe_module_forward.1} parent=1 // pred_fallthru
      _
    // Predicated region
    $region6: #{describe_module_forward.1} parent=1 // pred_check
      _
    $region7: #{describe_module_forward.1} parent=1 // pred_check_branch
      %15 = sbr.rel (0) target = $region9
    $region8: #{describe_module_forward.1} parent=1 // pred_region
      _
    $region9: #{describe_module_forward.1} parent=1 // pred_fallthru
      _
    // Predicated region
    $region10: #{describe_module_forward.1} parent=1 // pred_check
      _
    $region11: #{describe_module_forward.1} parent=1 // pred_check_branch
      %17 = sbr.rel (0) target = $region13
    $region12: #{describe_module_forward.1} parent=1 // pred_region
      %19 = vsyncadd [#allocation3], 0
      %s21 = sshll.u32 %s2, 4
      %s22 = int_to_ptr.hbm [resolvable:$true] %s21
      %s23 = sshll.u32 [#allocation2], 4
      %s24 = int_to_ptr.vmem [resolvable:$true] %s23
      %26 = dma.hbm_to_vmem [thread:$0]  %s22, 16, %s24, [#allocation3]
    $region13: #{describe_module_forward.1} parent=1 // pred_fallthru
      _
    // Predicated region
    $region14: #{describe_module_forward.1} parent=1 // pred_check
      _
    $region15: #{describe_module_forward.1} parent=1 // pred_check_branch
      %28 = sbr.rel (0) target = $region17
    $region16: #{describe_module_forward.1} parent=1 // pred_region
      %30 = vsyncadd [#allocation6], 0
      %s31 = sshll.u32 %s3, 4
      %s32 = int_to_ptr.hbm [resolvable:$true] %s31
      %s33 = sshll.u32 [#allocation5], 4
      %s34 = int_to_ptr.vmem [resolvable:$true] %s33
      %39 = dma.hbm_to_vmem [thread:$0]  %s32, 38912, %s34, [#allocation6], 512, 512, 32
    $region17: #{describe_module_forward.1} parent=1 // pred_fallthru
      _
    // Predicated region
    $region18: #{describe_module_forward.1} parent=1 // pred_check
      _
    $region19: #{describe_module_forward.1} parent=1 // pred_check_branch
      %41 = sbr.rel (0) target = $region21
    $region20: #{describe_module_forward.1} parent=1 // pred_region
      %43 = dma.done [#allocation3], 16
    $region21: #{describe_module_forward.1} parent=1 // pred_fallthru
      _
    // Predicated region
    $region22: #{describe_module_forward.1} parent=1 // pred_check
      _
    $region23: #{describe_module_forward.1} parent=1 // pred_check_branch
      %45 = sbr.rel (0) target = $region25
    $region24: #{describe_module_forward.1} parent=1 // pred_region
      %47 = dma.done [#allocation6], 38912
    $region25: #{describe_module_forward.1} parent=1 // pred_fallthru
      _
    %v48 = vld [vmem:[#allocation5 + $0x340] ss:$0 sm:$0xff]
    %v49 = vld [vmem:[%s1] sm:$0xff]
    %v50 = vld [vmem:[%s1 + $0x8] sm:$0xff]
    %v51 = vld [vmem:[#allocation5 + $0x580] sm:$0xff]
    %v52 = vld [vmem:[#allocation5 + $0x5a0] sm:$0xff]
    %v53 = vld [vmem:[#allocation5 + $0x5c0] sm:$0xff]
    %v54 = vld [vmem:[#allocation5 + $0x5e0] sm:$0xff]
    %v55 = vld [vmem:[#allocation5 + $0x600] sm:$0xff]
    %v56 = vld [vmem:[#allocation5 + $0x620] sm:$0xff]
    %v57 = vld [vmem:[#allocation5 + $0x640] sm:$0xff]
    %v58 = vld [vmem:[#allocation5 + $0x660] sm:$0xff]
    %v59 = vld [vmem:[#allocation5 + $0x680] sm:$0xff]
    %v60 = vld [vmem:[#allocation5 + $0x6a0] sm:$0xff]
    %v61 = vld [vmem:[#allocation5 + $0x6c0] sm:$0xff]
    %v62 = vld [vmem:[#allocation5 + $0x6e0] sm:$0xff]
    %v63 = vld [vmem:[#allocation5 + $0x700] sm:$0xff]
    %v64 = vld [vmem:[#allocation5 + $0x720] sm:$0xff]
    %v65 = vld [vmem:[#allocation5 + $0x740] sm:$0xff]
    %v66 = vld [vmem:[#allocation5 + $0x760] sm:$0xff]
    %v67 = vld [vmem:[#allocation5 + $0x780] sm:$0xff]
    %v68 = vld [vmem:[#allocation5 + $0x7a0] sm:$0xff]
    %v69 = vld [vmem:[#allocation5 + $0x7c0] sm:$0xff]
    %v70 = vld [vmem:[#allocation5 + $0x7e0] sm:$0xff]
    %v71 = vld [vmem:[#allocation5 + $0x800] sm:$0xff]
    %v72 = vld [vmem:[#allocation5 + $0x820] sm:$0xff]
    %v73 = vld [vmem:[#allocation5 + $0x840] sm:$0xff]
    %v74 = vld [vmem:[#allocation5 + $0x860] sm:$0xff]
    %v75 = vld [vmem:[#allocation5 + $0x880] sm:$0xff]
    %v76 = vld [vmem:[#allocation5 + $0x8a0] sm:$0xff]
    %v77 = vld [vmem:[#allocation5 + $0x8c0] sm:$0xff]
    %v78 = vld [vmem:[#allocation5 + $0x8e0] sm:$0xff]
    %v79 = vld [vmem:[#allocation5 + $0x900] sm:$0xff]
    %v80 = vld [vmem:[#allocation5 + $0x920] sm:$0xff]
    %v81 = vld [vmem:[#allocation5 + $0x940] sm:$0xff]
    %v82 = vld [vmem:[#allocation5 + $0x960] sm:$0xff]
    %v83 = vld [vmem:[#allocation5 + $0x588] sm:$0xff]
    %v84 = vld [vmem:[#allocation5 + $0x5a8] sm:$0xff]
    %v85 = vld [vmem:[#allocation5 + $0x5c8] sm:$0xff]
    %v86 = vld [vmem:[#allocation5 + $0x5e8] sm:$0xff]
    %v87 = vld [vmem:[#allocation5 + $0x608] sm:$0xff]
    %v88 = vld [vmem:[#allocation5 + $0x628] sm:$0xff]
    %v89 = vld [vmem:[#allocation5 + $0x648] sm:$0xff]
    %v90 = vld [vmem:[#allocation5 + $0x668] sm:$0xff]
    %v91 = vld [vmem:[#allocation5 + $0x688] sm:$0xff]
    %v92 = vld [vmem:[#allocation5 + $0x6a8] sm:$0xff]
    %v93 = vld [vmem:[#allocation5 + $0x6c8] sm:$0xff]
    %v94 = vld [vmem:[#allocation5 + $0x6e8] sm:$0xff]
    %v95 = vld [vmem:[#allocation5 + $0x708] sm:$0xff]
    %v96 = vld [vmem:[#allocation5 + $0x728] sm:$0xff]
    %v97 = vld [vmem:[#allocation5 + $0x748] sm:$0xff]
    %v98 = vld [vmem:[#allocation5 + $0x768] sm:$0xff]
    %v99 = vld [vmem:[#allocation5 + $0x788] sm:$0xff]
    %v100 = vld [vmem:[#allocation5 + $0x7a8] sm:$0xff]
    %v101 = vld [vmem:[#allocation5 + $0x7c8] sm:$0xff]
    %v102 = vld [vmem:[#allocation5 + $0x7e8] sm:$0xff]
    %v103 = vld [vmem:[#allocation5 + $0x808] sm:$0xff]
    %v104 = vld [vmem:[#allocation5 + $0x828] sm:$0xff]
    %v105 = vld [vmem:[#allocation5 + $0x848] sm:$0xff]
    %v106 = vld [vmem:[#allocation5 + $0x868] sm:$0xff]
    %v107 = vld [vmem:[#allocation5 + $0x888] sm:$0xff]
    %v108 = vld [vmem:[#allocation5 + $0x8a8] sm:$0xff]
    %v109 = vld [vmem:[#allocation5 + $0x8c8] sm:$0xff]
    %v110 = vld [vmem:[#allocation5 + $0x8e8] sm:$0xff]
    %v111 = vld [vmem:[#allocation5 + $0x908] sm:$0xff]
    %v112 = vld [vmem:[#allocation5 + $0x928] sm:$0xff]
    %v113 = vld [vmem:[#allocation5 + $0x948] sm:$0xff]
    %v114 = vld [vmem:[#allocation5 + $0x968] sm:$0xff]
    %116 = vst [vmem:[#allocation1] ss:$4 sm:$0xff] %v49
    %v117 = vld.sshfl [vmem:[#allocation1 + $0x10] sm:$0xff pattern:$0x73625140]
    %v118 = vld.sshfl [vmem:[#allocation1 + $0x18] sm:$0xff pattern:$0x73625140]
    %121 = vmatpush.msra.mxu0 %v98
    %122 = vmatpush.msra.mxu0 %v97
    %123 = vmatpush.msra.mxu0 %v96
    %124 = vmatpush.msra.mxu0 %v95
    %125 = vmatpush.msra.mxu0 %v94
    %126 = vmatpush.msra.mxu0 %v93
    %127 = vmatpush.msra.mxu0 %v92
    %128 = vmatpush.msra.mxu0 %v91
    %129 = vmatpush.msra.mxu0 %v90
    %130 = vmatpush.msra.mxu0 %v89
    %131 = vmatpush.msra.mxu0 %v88
    %132 = vmatpush.msra.mxu0 %v87
    %133 = vmatpush.msra.mxu0 %v86
    %134 = vmatpush.msra.mxu0 %v85
    %135 = vmatpush.msra.mxu0 %v84
    %136 = vmatpush.msra.mxu0 %v83
    %137 = vmatmul.f32.gmra.mxu0 %v117
    %v138 = vpop.f32.mrf.mxu0
    %v139 = vadd.f32 0.0, %v138
    %140 = vdwg.mxu0
    %141 = vmatpush.msra.mxu0 %v114
    %142 = vmatpush.msra.mxu0 %v113
    %143 = vmatpush.msra.mxu0 %v112
    %144 = vmatpush.msra.mxu0 %v111
    %145 = vmatpush.msra.mxu0 %v110
    %146 = vmatpush.msra.mxu0 %v109
    %147 = vmatpush.msra.mxu0 %v108
    %148 = vmatpush.msra.mxu0 %v107
    %149 = vmatpush.msra.mxu0 %v106
    %150 = vmatpush.msra.mxu0 %v105
    %151 = vmatpush.msra.mxu0 %v104
    %152 = vmatpush.msra.mxu0 %v103
    %153 = vmatpush.msra.mxu0 %v102
    %154 = vmatpush.msra.mxu0 %v101
    %155 = vmatpush.msra.mxu0 %v100
    %156 = vmatpush.msra.mxu0 %v99
    %157 = vmatmul.f32.gmra.mxu0 %v118
    %v158 = vpop.f32.mrf.mxu0
    %v159 = vadd.f32 %v139, %v158
    %160 = vdwg.mxu0
    %161 = vst [vmem:[#allocation1] ss:$4 sm:$0xff] %v49
    %v162 = vld.sshfl [vmem:[#allocation1] sm:$0xff pattern:$0x73625140]
    %v163 = vld.sshfl [vmem:[#allocation1 + $0x8] sm:$0xff pattern:$0x73625140]
    %166 = vmatpush.msra.mxu0 %v66
    %167 = vmatpush.msra.mxu0 %v65
    %168 = vmatpush.msra.mxu0 %v64
    %169 = vmatpush.msra.mxu0 %v63
    %170 = vmatpush.msra.mxu0 %v62
    %171 = vmatpush.msra.mxu0 %v61
    %172 = vmatpush.msra.mxu0 %v60
    %173 = vmatpush.msra.mxu0 %v59
    %174 = vmatpush.msra.mxu0 %v58
    %175 = vmatpush.msra.mxu0 %v57
    %176 = vmatpush.msra.mxu0 %v56
    %177 = vmatpush.msra.mxu0 %v55
    %178 = vmatpush.msra.mxu0 %v54
    %179 = vmatpush.msra.mxu0 %v53
    %180 = vmatpush.msra.mxu0 %v52
    %181 = vmatpush.msra.mxu0 %v51
    %182 = vmatmul.f32.gmra.mxu0 %v162
    %v183 = vpop.f32.mrf.mxu0
    %v184 = vadd.f32 %v159, %v183
    %185 = vdwg.mxu0
    %186 = vmatpush.msra.mxu0 %v82
    %187 = vmatpush.msra.mxu0 %v81
    %188 = vmatpush.msra.mxu0 %v80
    %189 = vmatpush.msra.mxu0 %v79
    %190 = vmatpush.msra.mxu0 %v78
    %191 = vmatpush.msra.mxu0 %v77
    %192 = vmatpush.msra.mxu0 %v76
    %193 = vmatpush.msra.mxu0 %v75
    %194 = vmatpush.msra.mxu0 %v74
    %195 = vmatpush.msra.mxu0 %v73
    %196 = vmatpush.msra.mxu0 %v72
    %197 = vmatpush.msra.mxu0 %v71
    %198 = vmatpush.msra.mxu0 %v70
    %199 = vmatpush.msra.mxu0 %v69
    %200 = vmatpush.msra.mxu0 %v68
    %201 = vmatpush.msra.mxu0 %v67
    %202 = vmatmul.f32.gmra.mxu0 %v163
    %v203 = vpop.f32.mrf.mxu0
    %v204 = vadd.f32 %v184, %v203
    %205 = vdwg.mxu0
    %v206 = vld [vmem:[#allocation5 + $0x590] sm:$0xff]
    %v207 = vld [vmem:[#allocation5 + $0x5b0] sm:$0xff]
    %v208 = vld [vmem:[#allocation5 + $0x5d0] sm:$0xff]
    %v209 = vld [vmem:[#allocation5 + $0x5f0] sm:$0xff]
    %v210 = vld [vmem:[#allocation5 + $0x610] sm:$0xff]
    %v211 = vld [vmem:[#allocation5 + $0x630] sm:$0xff]
    %v212 = vld [vmem:[#allocation5 + $0x650] sm:$0xff]
    %v213 = vld [vmem:[#allocation5 + $0x670] sm:$0xff]
    %v214 = vld [vmem:[#allocation5 + $0x690] sm:$0xff]
    %v215 = vld [vmem:[#allocation5 + $0x6b0] sm:$0xff]
    %v216 = vld [vmem:[#allocation5 + $0x6d0] sm:$0xff]
    %v217 = vld [vmem:[#allocation5 + $0x6f0] sm:$0xff]
    %v218 = vld [vmem:[#allocation5 + $0x710] sm:$0xff]
    %v219 = vld [vmem:[#allocation5 + $0x730] sm:$0xff]
    %v220 = vld [vmem:[#allocation5 + $0x750] sm:$0xff]
    %v221 = vld [vmem:[#allocation5 + $0x770] sm:$0xff]
    %v222 = vld [vmem:[#allocation5 + $0x790] sm:$0xff]
    %v223 = vld [vmem:[#allocation5 + $0x7b0] sm:$0xff]
    %v224 = vld [vmem:[#allocation5 + $0x7d0] sm:$0xff]
    %v225 = vld [vmem:[#allocation5 + $0x7f0] sm:$0xff]
    %v226 = vld [vmem:[#allocation5 + $0x810] sm:$0xff]
    %v227 = vld [vmem:[#allocation5 + $0x830] sm:$0xff]
    %v228 = vld [vmem:[#allocation5 + $0x850] sm:$0xff]
    %v229 = vld [vmem:[#allocation5 + $0x870] sm:$0xff]
    %v230 = vld [vmem:[#allocation5 + $0x890] sm:$0xff]
    %v231 = vld [vmem:[#allocation5 + $0x8b0] sm:$0xff]
    %v232 = vld [vmem:[#allocation5 + $0x8d0] sm:$0xff]
    %v233 = vld [vmem:[#allocation5 + $0x8f0] sm:$0xff]
    %v234 = vld [vmem:[#allocation5 + $0x910] sm:$0xff]
    %v235 = vld [vmem:[#allocation5 + $0x930] sm:$0xff]
    %v236 = vld [vmem:[#allocation5 + $0x950] sm:$0xff]
    %v237 = vld [vmem:[#allocation5 + $0x970] sm:$0xff]
    %239 = vst [vmem:[#allocation1] ss:$4 sm:$0xff] %v50
    %v240 = vld.sshfl [vmem:[#allocation1] sm:$0xff pattern:$0x73625140]
    %v241 = vld.sshfl [vmem:[#allocation1 + $0x8] sm:$0xff pattern:$0x73625140]
    %244 = vmatpush.msra.mxu0 %v221
    %245 = vmatpush.msra.mxu0 %v220
    %246 = vmatpush.msra.mxu0 %v219
    %247 = vmatpush.msra.mxu0 %v218
    %248 = vmatpush.msra.mxu0 %v217
    %249 = vmatpush.msra.mxu0 %v216
    %250 = vmatpush.msra.mxu0 %v215
    %251 = vmatpush.msra.mxu0 %v214
    %252 = vmatpush.msra.mxu0 %v213
    %253 = vmatpush.msra.mxu0 %v212
    %254 = vmatpush.msra.mxu0 %v211
    %255 = vmatpush.msra.mxu0 %v210
    %256 = vmatpush.msra.mxu0 %v209
    %257 = vmatpush.msra.mxu0 %v208
    %258 = vmatpush.msra.mxu0 %v207
    %259 = vmatpush.msra.mxu0 %v206
    %260 = vmatmul.f32.gmra.mxu0 %v240
    %v261 = vpop.f32.mrf.mxu0
    %v262 = vadd.f32 0.0, %v261
    %263 = vdwg.mxu0
    %264 = vmatpush.msra.mxu0 %v237
    %265 = vmatpush.msra.mxu0 %v236
    %266 = vmatpush.msra.mxu0 %v235
    %267 = vmatpush.msra.mxu0 %v234
    %268 = vmatpush.msra.mxu0 %v233
    %269 = vmatpush.msra.mxu0 %v232
    %270 = vmatpush.msra.mxu0 %v231
    %271 = vmatpush.msra.mxu0 %v230
    %272 = vmatpush.msra.mxu0 %v229
    %273 = vmatpush.msra.mxu0 %v228
    %274 = vmatpush.msra.mxu0 %v227
    %275 = vmatpush.msra.mxu0 %v226
    %276 = vmatpush.msra.mxu0 %v225
    %277 = vmatpush.msra.mxu0 %v224
    %278 = vmatpush.msra.mxu0 %v223
    %279 = vmatpush.msra.mxu0 %v222
    %280 = vmatmul.f32.gmra.mxu0 %v241
    %v281 = vpop.f32.mrf.mxu0
    %v282 = vadd.f32 %v262, %v281
    %283 = vdwg.mxu0
    %v284 = vadd.f32 %v204, %v282
    %v285 = vld [vmem:[#allocation5 + $0x598] sm:$0xff]
    %v286 = vld [vmem:[#allocation5 + $0x5b8] sm:$0xff]
    %v287 = vld [vmem:[#allocation5 + $0x5d8] sm:$0xff]
    %v288 = vld [vmem:[#allocation5 + $0x5f8] sm:$0xff]
    %v289 = vld [vmem:[#allocation5 + $0x618] sm:$0xff]
    %v290 = vld [vmem:[#allocation5 + $0x638] sm:$0xff]
    %v291 = vld [vmem:[#allocation5 + $0x658] sm:$0xff]
    %v292 = vld [vmem:[#allocation5 + $0x678] sm:$0xff]
    %v293 = vld [vmem:[#allocation5 + $0x698] sm:$0xff]
    %v294 = vld [vmem:[#allocation5 + $0x6b8] sm:$0xff]
    %v295 = vld [vmem:[#allocation5 + $0x6d8] sm:$0xff]
    %v296 = vld [vmem:[#allocation5 + $0x6f8] sm:$0xff]
    %v297 = vld [vmem:[#allocation5 + $0x718] sm:$0xff]
    %v298 = vld [vmem:[#allocation5 + $0x738] sm:$0xff]
    %v299 = vld [vmem:[#allocation5 + $0x758] sm:$0xff]
    %v300 = vld [vmem:[#allocation5 + $0x778] sm:$0xff]
    %v301 = vld [vmem:[#allocation5 + $0x798] sm:$0xff]
    %v302 = vld [vmem:[#allocation5 + $0x7b8] sm:$0xff]
    %v303 = vld [vmem:[#allocation5 + $0x7d8] sm:$0xff]
    %v304 = vld [vmem:[#allocation5 + $0x7f8] sm:$0xff]
    %v305 = vld [vmem:[#allocation5 + $0x818] sm:$0xff]
    %v306 = vld [vmem:[#allocation5 + $0x838] sm:$0xff]
    %v307 = vld [vmem:[#allocation5 + $0x858] sm:$0xff]
    %v308 = vld [vmem:[#allocation5 + $0x878] sm:$0xff]
    %v309 = vld [vmem:[#allocation5 + $0x898] sm:$0xff]
    %v310 = vld [vmem:[#allocation5 + $0x8b8] sm:$0xff]
    %v311 = vld [vmem:[#allocation5 + $0x8d8] sm:$0xff]
    %v312 = vld [vmem:[#allocation5 + $0x8f8] sm:$0xff]
    %v313 = vld [vmem:[#allocation5 + $0x918] sm:$0xff]
    %v314 = vld [vmem:[#allocation5 + $0x938] sm:$0xff]
    %v315 = vld [vmem:[#allocation5 + $0x958] sm:$0xff]
    %v316 = vld [vmem:[#allocation5 + $0x978] sm:$0xff]
    %317 = vst [vmem:[#allocation1] ss:$4 sm:$0xff] %v50
    %v318 = vld.sshfl [vmem:[#allocation1 + $0x10] sm:$0xff pattern:$0x73625140]
    %v319 = vld.sshfl [vmem:[#allocation1 + $0x18] sm:$0xff pattern:$0x73625140]
    %322 = vmatpush.msra.mxu0 %v300
    %323 = vmatpush.msra.mxu0 %v299
    %324 = vmatpush.msra.mxu0 %v298
    %325 = vmatpush.msra.mxu0 %v297
    %326 = vmatpush.msra.mxu0 %v296
    %327 = vmatpush.msra.mxu0 %v295
    %328 = vmatpush.msra.mxu0 %v294
    %329 = vmatpush.msra.mxu0 %v293
    %330 = vmatpush.msra.mxu0 %v292
    %331 = vmatpush.msra.mxu0 %v291
    %332 = vmatpush.msra.mxu0 %v290
    %333 = vmatpush.msra.mxu0 %v289
    %334 = vmatpush.msra.mxu0 %v288
    %335 = vmatpush.msra.mxu0 %v287
    %336 = vmatpush.msra.mxu0 %v286
    %337 = vmatpush.msra.mxu0 %v285
    %338 = vmatmul.f32.gmra.mxu0 %v318
    %v339 = vpop.f32.mrf.mxu0
    %v340 = vadd.f32 0.0, %v339
    %341 = vdwg.mxu0
    %342 = vmatpush.msra.mxu0 %v316
    %343 = vmatpush.msra.mxu0 %v315
    %344 = vmatpush.msra.mxu0 %v314
    %345 = vmatpush.msra.mxu0 %v313
    %346 = vmatpush.msra.mxu0 %v312
    %347 = vmatpush.msra.mxu0 %v311
    %348 = vmatpush.msra.mxu0 %v310
    %349 = vmatpush.msra.mxu0 %v309
    %350 = vmatpush.msra.mxu0 %v308
    %351 = vmatpush.msra.mxu0 %v307
    %352 = vmatpush.msra.mxu0 %v306
    %353 = vmatpush.msra.mxu0 %v305
    %354 = vmatpush.msra.mxu0 %v304
    %355 = vmatpush.msra.mxu0 %v303
    %356 = vmatpush.msra.mxu0 %v302
    %357 = vmatpush.msra.mxu0 %v301
    %358 = vmatmul.f32.gmra.mxu0 %v319
    %v359 = vpop.f32.mrf.mxu0
    %v360 = vadd.f32 %v340, %v359
    %361 = vdwg.mxu0
    %v362 = vadd.f32 %v284, %v360
    %v363 = vadd.f32 %v362, %v48
    %v364 = vld [vmem:[#allocation5 + $0x280] sm:$0xff]
    %v365 = vld [vmem:[#allocation5 + $0x2a0] sm:$0xff]
    %v366 = vld [vmem:[#allocation5 + $0x2c0] sm:$0xff]
    %v367 = vld [vmem:[#allocation5 + $0x2e0] sm:$0xff]
    %v368 = vld [vmem:[#allocation5 + $0x300] ss:$0 sm:$0xff]
    %v369 = vld [vmem:[#allocation2] sm:$0x1]
    %vm370 = vcmask 261120
    %v372 = vsel %vm370, %v369, 0
    %374 = vmatpush.msra.mxu0 0.0
    %375 = vmatpush.msra.mxu0 0.0
    %376 = vmatpush.msra.mxu0 0.0
    %377 = vmatpush.msra.mxu0 0.0
    %378 = vmatpush.msra.mxu0 0.0
    %379 = vmatpush.msra.mxu0 0.0
    %380 = vmatpush.msra.mxu0 0.0
    %381 = vmatpush.msra.mxu0 0.0
    %382 = vmatpush.msra.mxu0 0.0
    %383 = vmatpush.msra.mxu0 0.0
    %384 = vmatpush.msra.mxu0 0.0
    %385 = vmatpush.msra.mxu0 0.0
    %386 = vmatpush.msra.mxu0 %v367
    %387 = vmatpush.msra.mxu0 %v366
    %388 = vmatpush.msra.mxu0 %v365
    %389 = vmatpush.msra.mxu0 %v364
    %390 = vmatmul.f32.gmra.mxu0 %v372
    %v391 = vpop.f32.mrf.mxu0
    %v392 = vadd.f32 %v368, %v391
    %393 = vdwg.mxu0
    %v394 = vld [vmem:[%s0] sm:$0xff]
    %v395 = vlaneseq
    %v396 = vand.u32 %v395, 127
    %397 = vset.pattern.permute.xlu0 0
    %398 = vperm.xlu0 %397, %v394
    %v399 = vpop.permute.xlu0 %398
    %vm400 = vcmp.eq.s32.totalorder %v399, %v396
    %v401 = vsel %vm400, 1, 0
    %v402 = vcvt.s32.f32 %v401
    %v403 = vld [vmem:[#allocation5] sm:$0xff]
    %v404 = vld [vmem:[#allocation5 + $0x8] sm:$0xff]
    %v405 = vld [vmem:[#allocation5 + $0x10] sm:$0xff]
    %v406 = vld [vmem:[#allocation5 + $0x18] sm:$0xff]
    %v407 = vld [vmem:[#allocation5 + $0x20] sm:$0xff]
    %v408 = vld [vmem:[#allocation5 + $0x28] sm:$0xff]
    %v409 = vld [vmem:[#allocation5 + $0x30] sm:$0xff]
    %v410 = vld [vmem:[#allocation5 + $0x38] sm:$0xff]
    %v411 = vld [vmem:[#allocation5 + $0x40] sm:$0xff]
    %v412 = vld [vmem:[#allocation5 + $0x48] sm:$0xff]
    %v413 = vld [vmem:[#allocation5 + $0x50] sm:$0xff]
    %v414 = vld [vmem:[#allocation5 + $0x58] sm:$0xff]
    %s415 = scalar_lea.vmem [#allocation5], 608
    %v416 = vld [vmem:[%s415] ss:$8 sm:$0xf]
    %v418 = vperm.slane %v416, 0
    %v419 = vperm.slane %v416, 1
    %v420 = vperm.slane %v416, 2
    %v421 = vperm.slane %v416, 3
    %vm426 = vcmask 195584
    %v428 = vsel %vm426, %v402, 0
    %430 = vmatpush.msra.mxu0 0.0
    %431 = vmatpush.msra.mxu0 0.0
    %432 = vmatpush.msra.mxu0 0.0
    %433 = vmatpush.msra.mxu0 0.0
    %434 = vmatpush.msra.mxu0 0.0
    %435 = vmatpush.msra.mxu0 0.0
    %436 = vmatpush.msra.mxu0 0.0
    %437 = vmatpush.msra.mxu0 0.0
    %438 = vmatpush.msra.mxu0 0.0
    %439 = vmatpush.msra.mxu0 0.0
    %440 = vmatpush.msra.mxu0 0.0
    %441 = vmatpush.msra.mxu0 0.0
    %442 = vmatpush.msra.mxu0 0.0
    %443 = vmatpush.msra.mxu0 %v411
    %444 = vmatpush.msra.mxu0 %v407
    %445 = vmatpush.msra.mxu0 %v403
    %446 = vmatmul.f32.gmra.mxu0 %v428
    %v447 = vpop.f32.mrf.mxu0
    %v448 = vadd.f32 %v418, %v447
    %449 = vdwg.mxu0
    %450 = vmatpush.msra.mxu0 0.0
    %451 = vmatpush.msra.mxu0 0.0
    %452 = vmatpush.msra.mxu0 0.0
    %453 = vmatpush.msra.mxu0 0.0
    %454 = vmatpush.msra.mxu0 0.0
    %455 = vmatpush.msra.mxu0 0.0
    %456 = vmatpush.msra.mxu0 0.0
    %457 = vmatpush.msra.mxu0 0.0
    %458 = vmatpush.msra.mxu0 0.0
    %459 = vmatpush.msra.mxu0 0.0
    %460 = vmatpush.msra.mxu0 0.0
    %461 = vmatpush.msra.mxu0 0.0
    %462 = vmatpush.msra.mxu0 0.0
    %463 = vmatpush.msra.mxu0 %v412
    %464 = vmatpush.msra.mxu0 %v408
    %465 = vmatpush.msra.mxu0 %v404
    %466 = vmatmul.f32.gmra.mxu0 %v428
    %v467 = vpop.f32.mrf.mxu0
    %v468 = vadd.f32 %v419, %v467
    %469 = vdwg.mxu0
    %470 = vmatpush.msra.mxu0 0.0
    %471 = vmatpush.msra.mxu0 0.0
    %472 = vmatpush.msra.mxu0 0.0
    %473 = vmatpush.msra.mxu0 0.0
    %474 = vmatpush.msra.mxu0 0.0
    %475 = vmatpush.msra.mxu0 0.0
    %476 = vmatpush.msra.mxu0 0.0
    %477 = vmatpush.msra.mxu0 0.0
    %478 = vmatpush.msra.mxu0 0.0
    %479 = vmatpush.msra.mxu0 0.0
    %480 = vmatpush.msra.mxu0 0.0
    %481 = vmatpush.msra.mxu0 0.0
    %482 = vmatpush.msra.mxu0 0.0
    %483 = vmatpush.msra.mxu0 %v413
    %484 = vmatpush.msra.mxu0 %v409
    %485 = vmatpush.msra.mxu0 %v405
    %486 = vmatmul.f32.gmra.mxu0 %v428
    %v487 = vpop.f32.mrf.mxu0
    %v488 = vadd.f32 %v420, %v487
    %489 = vdwg.mxu0
    %490 = vmatpush.msra.mxu0 0.0
    %491 = vmatpush.msra.mxu0 0.0
    %492 = vmatpush.msra.mxu0 0.0
    %493 = vmatpush.msra.mxu0 0.0
    %494 = vmatpush.msra.mxu0 0.0
    %495 = vmatpush.msra.mxu0 0.0
    %496 = vmatpush.msra.mxu0 0.0
    %497 = vmatpush.msra.mxu0 0.0
    %498 = vmatpush.msra.mxu0 0.0
    %499 = vmatpush.msra.mxu0 0.0
    %500 = vmatpush.msra.mxu0 0.0
    %501 = vmatpush.msra.mxu0 0.0
    %502 = vmatpush.msra.mxu0 0.0
    %503 = vmatpush.msra.mxu0 %v414
    %504 = vmatpush.msra.mxu0 %v410
    %505 = vmatpush.msra.mxu0 %v406
    %506 = vmatmul.f32.gmra.mxu0 %v428
    %v507 = vpop.f32.mrf.mxu0
    %v508 = vadd.f32 %v421, %v507
    %509 = vdwg.mxu0
    %v510 = vld [vmem:[#allocation5 + $0x60] sm:$0xff]
    %v511 = vld [vmem:[#allocation5 + $0x68] sm:$0xff]
    %v512 = vld [vmem:[#allocation5 + $0x70] sm:$0xff]
    %v513 = vld [vmem:[#allocation5 + $0x78] sm:$0xff]
    %v514 = vld [vmem:[#allocation5 + $0x80] sm:$0xff]
    %v515 = vld [vmem:[#allocation5 + $0x88] sm:$0xff]
    %v516 = vld [vmem:[#allocation5 + $0x90] sm:$0xff]
    %v517 = vld [vmem:[#allocation5 + $0x98] sm:$0xff]
    %v518 = vld [vmem:[#allocation5 + $0xa0] sm:$0xff]
    %v519 = vld [vmem:[#allocation5 + $0xa8] sm:$0xff]
    %v520 = vld [vmem:[#allocation5 + $0xb0] sm:$0xff]
    %v521 = vld [vmem:[#allocation5 + $0xb8] sm:$0xff]
    %v522 = vld [vmem:[#allocation5 + $0xc0] sm:$0xff]
    %v523 = vld [vmem:[#allocation5 + $0xc8] sm:$0xff]
    %v524 = vld [vmem:[#allocation5 + $0xd0] sm:$0xff]
    %v525 = vld [vmem:[#allocation5 + $0xd8] sm:$0xff]
    %v526 = vld [vmem:[#allocation5 + $0xe0] sm:$0xff]
    %v527 = vld [vmem:[#allocation5 + $0xe8] sm:$0xff]
    %v528 = vld [vmem:[#allocation5 + $0xf0] sm:$0xff]
    %v529 = vld [vmem:[#allocation5 + $0xf8] sm:$0xff]
    %v530 = vld [vmem:[#allocation5 + $0x100] sm:$0xff]
    %v531 = vld [vmem:[#allocation5 + $0x108] sm:$0xff]
    %v532 = vld [vmem:[#allocation5 + $0x110] sm:$0xff]
    %v533 = vld [vmem:[#allocation5 + $0x118] sm:$0xff]
    %v534 = vld [vmem:[#allocation5 + $0x120] sm:$0xff]
    %v535 = vld [vmem:[#allocation5 + $0x128] sm:$0xff]
    %v536 = vld [vmem:[#allocation5 + $0x130] sm:$0xff]
    %v537 = vld [vmem:[#allocation5 + $0x138] sm:$0xff]
    %v538 = vld [vmem:[#allocation5 + $0x140] sm:$0xff]
    %v539 = vld [vmem:[#allocation5 + $0x148] sm:$0xff]
    %v540 = vld [vmem:[#allocation5 + $0x150] sm:$0xff]
    %v541 = vld [vmem:[#allocation5 + $0x158] sm:$0xff]
    %v542 = vld [vmem:[#allocation5 + $0x160] sm:$0xff]
    %v543 = vld [vmem:[#allocation5 + $0x168] sm:$0xff]
    %v544 = vld [vmem:[#allocation5 + $0x170] sm:$0xff]
    %v545 = vld [vmem:[#allocation5 + $0x178] sm:$0xff]
    %v546 = vld [vmem:[#allocation5 + $0x180] sm:$0xff]
    %v547 = vld [vmem:[#allocation5 + $0x188] sm:$0xff]
    %v548 = vld [vmem:[#allocation5 + $0x190] sm:$0xff]
    %v549 = vld [vmem:[#allocation5 + $0x198] sm:$0xff]
    %v550 = vld [vmem:[#allocation5 + $0x1a0] sm:$0xff]
    %v551 = vld [vmem:[#allocation5 + $0x1a8] sm:$0xff]
    %v552 = vld [vmem:[#allocation5 + $0x1b0] sm:$0xff]
    %v553 = vld [vmem:[#allocation5 + $0x1b8] sm:$0xff]
    %v554 = vld [vmem:[#allocation5 + $0x1c0] sm:$0xff]
    %v555 = vld [vmem:[#allocation5 + $0x1c8] sm:$0xff]
    %v556 = vld [vmem:[#allocation5 + $0x1d0] sm:$0xff]
    %v557 = vld [vmem:[#allocation5 + $0x1d8] sm:$0xff]
    %v558 = vld [vmem:[#allocation5 + $0x1e0] sm:$0xff]
    %v559 = vld [vmem:[#allocation5 + $0x1e8] sm:$0xff]
    %v560 = vld [vmem:[#allocation5 + $0x1f0] sm:$0xff]
    %v561 = vld [vmem:[#allocation5 + $0x1f8] sm:$0xff]
    %v562 = vld [vmem:[#allocation5 + $0x200] sm:$0xff]
    %v563 = vld [vmem:[#allocation5 + $0x208] sm:$0xff]
    %v564 = vld [vmem:[#allocation5 + $0x210] sm:$0xff]
    %v565 = vld [vmem:[#allocation5 + $0x218] sm:$0xff]
    %v566 = vld [vmem:[#allocation5 + $0x220] sm:$0xff]
    %v567 = vld [vmem:[#allocation5 + $0x228] sm:$0xff]
    %v568 = vld [vmem:[#allocation5 + $0x230] sm:$0xff]
    %v569 = vld [vmem:[#allocation5 + $0x238] sm:$0xff]
    %v570 = vld [vmem:[#allocation5 + $0x240] sm:$0xff]
    %v571 = vld [vmem:[#allocation5 + $0x248] sm:$0xff]
    %v572 = vld [vmem:[#allocation5 + $0x250] sm:$0xff]
    %v573 = vld [vmem:[#allocation5 + $0x258] sm:$0xff]
    %574 = vmatpush.msra.mxu0 %v570
    %575 = vmatpush.msra.mxu0 %v566
    %576 = vmatpush.msra.mxu0 %v562
    %577 = vmatpush.msra.mxu0 %v558
    %578 = vmatpush.msra.mxu0 %v554
    %579 = vmatpush.msra.mxu0 %v550
    %580 = vmatpush.msra.mxu0 %v546
    %581 = vmatpush.msra.mxu0 %v542
    %582 = vmatpush.msra.mxu0 %v538
    %583 = vmatpush.msra.mxu0 %v534
    %584 = vmatpush.msra.mxu0 %v530
    %585 = vmatpush.msra.mxu0 %v526
    %586 = vmatpush.msra.mxu0 %v522
    %587 = vmatpush.msra.mxu0 %v518
    %588 = vmatpush.msra.mxu0 %v514
    %589 = vmatpush.msra.mxu0 %v510
    %590 = vmatmul.f32.gmra.mxu0 0.0
    %v591 = vpop.f32.mrf.mxu0
    %v592 = vadd.f32 0.0, %v591
    %593 = vdwg.mxu0
    %594 = vmatpush.msra.mxu0 %v571
    %595 = vmatpush.msra.mxu0 %v567
    %596 = vmatpush.msra.mxu0 %v563
    %597 = vmatpush.msra.mxu0 %v559
    %598 = vmatpush.msra.mxu0 %v555
    %599 = vmatpush.msra.mxu0 %v551
    %600 = vmatpush.msra.mxu0 %v547
    %601 = vmatpush.msra.mxu0 %v543
    %602 = vmatpush.msra.mxu0 %v539
    %603 = vmatpush.msra.mxu0 %v535
    %604 = vmatpush.msra.mxu0 %v531
    %605 = vmatpush.msra.mxu0 %v527
    %606 = vmatpush.msra.mxu0 %v523
    %607 = vmatpush.msra.mxu0 %v519
    %608 = vmatpush.msra.mxu0 %v515
    %609 = vmatpush.msra.mxu0 %v511
    %610 = vmatmul.f32.gmra.mxu0 0.0
    %v611 = vpop.f32.mrf.mxu0
    %v612 = vadd.f32 0.0, %v611
    %613 = vdwg.mxu0
    %614 = vmatpush.msra.mxu0 %v572
    %615 = vmatpush.msra.mxu0 %v568
    %616 = vmatpush.msra.mxu0 %v564
    %617 = vmatpush.msra.mxu0 %v560
    %618 = vmatpush.msra.mxu0 %v556
    %619 = vmatpush.msra.mxu0 %v552
    %620 = vmatpush.msra.mxu0 %v548
    %621 = vmatpush.msra.mxu0 %v544
    %622 = vmatpush.msra.mxu0 %v540
    %623 = vmatpush.msra.mxu0 %v536
    %624 = vmatpush.msra.mxu0 %v532
    %625 = vmatpush.msra.mxu0 %v528
    %626 = vmatpush.msra.mxu0 %v524
    %627 = vmatpush.msra.mxu0 %v520
    %628 = vmatpush.msra.mxu0 %v516
    %629 = vmatpush.msra.mxu0 %v512
    %630 = vmatmul.f32.gmra.mxu0 0.0
    %v631 = vpop.f32.mrf.mxu0
    %v632 = vadd.f32 0.0, %v631
    %633 = vdwg.mxu0
    %634 = vmatpush.msra.mxu0 %v573
    %635 = vmatpush.msra.mxu0 %v569
    %636 = vmatpush.msra.mxu0 %v565
    %637 = vmatpush.msra.mxu0 %v561
    %638 = vmatpush.msra.mxu0 %v557
    %639 = vmatpush.msra.mxu0 %v553
    %640 = vmatpush.msra.mxu0 %v549
    %641 = vmatpush.msra.mxu0 %v545
    %642 = vmatpush.msra.mxu0 %v541
    %643 = vmatpush.msra.mxu0 %v537
    %644 = vmatpush.msra.mxu0 %v533
    %645 = vmatpush.msra.mxu0 %v529
    %646 = vmatpush.msra.mxu0 %v525
    %647 = vmatpush.msra.mxu0 %v521
    %648 = vmatpush.msra.mxu0 %v517
    %649 = vmatpush.msra.mxu0 %v513
    %650 = vmatmul.f32.gmra.mxu0 0.0
    %v651 = vpop.f32.mrf.mxu0
    %v652 = vadd.f32 0.0, %v651
    %653 = vdwg.mxu0
    %v654 = vadd.f32 %v448, %v592
    %v655 = vadd.f32 %v468, %v612
    %v656 = vadd.f32 %v488, %v632
    %v657 = vadd.f32 %v508, %v652
    %v658 = vxor.u32 %v654, 2147483648
    %v659 = vxor.u32 %v655, 2147483648
    %v660 = vxor.u32 %v657, 2147483648
    %v661 = vmul.f32 %v658, 1.442695
    %v662 = vpow.pop %v661
    %v663 = vmul.f32 %v659, 1.442695
    %v664 = vpow.pop %v663
    %v665 = vmul.f32 %v660, 1.442695
    %v666 = vpow.pop %v665
    %v667 = vadd.f32 %v662, 1.0
    %v668 = vadd.f32 %v664, 1.0
    %v669 = vadd.f32 %v666, 1.0
    %v670 = vrcp.pop %v667
    %v671 = vmul.f32 %v667, %v670
    %v672 = vsub.f32 1.0, %v671
    %v673 = vmul.f32 %v670, %v672
    %v674 = vadd.f32 %v670, %v673
    %vm675 = vweird.f32 %v667
    %vm676 = vweird.f32 %v670
    %vm677 = vmor %vm675, %vm676
    %v678 = vsel %vm677, %v670, %v674
    %v679 = vand.u32 2147483647, %v667
    %vm680 = vcmp.eq.f32.partialorder %v679, 8.507059e+37
    %v681 = vand.u32 %v667, 2147483648
    %v682 = vor.u32 1.1754944e-38, %v681
    %v683 = vsel %vm680, %v682, %v678
    %v684 = vmul.f32 1.0, %v683
    %v685 = vrcp.pop %v668
    %v686 = vmul.f32 %v668, %v685
    %v687 = vsub.f32 1.0, %v686
    %v688 = vmul.f32 %v685, %v687
    %v689 = vadd.f32 %v685, %v688
    %vm690 = vweird.f32 %v668
    %vm691 = vweird.f32 %v685
    %vm692 = vmor %vm690, %vm691
    %v693 = vsel %vm692, %v685, %v689
    %v694 = vand.u32 2147483647, %v668
    %vm695 = vcmp.eq.f32.partialorder %v694, 8.507059e+37
    %v696 = vand.u32 %v668, 2147483648
    %v697 = vor.u32 1.1754944e-38, %v696
    %v698 = vsel %vm695, %v697, %v693
    %v699 = vmul.f32 1.0, %v698
    %v700 = vrcp.pop %v669
    %v701 = vmul.f32 %v669, %v700
    %v702 = vsub.f32 1.0, %v701
    %v703 = vmul.f32 %v700, %v702
    %v704 = vadd.f32 %v700, %v703
    %vm705 = vweird.f32 %v669
    %vm706 = vweird.f32 %v700
    %vm707 = vmor %vm705, %vm706
    %v708 = vsel %vm707, %v700, %v704
    %v709 = vand.u32 2147483647, %v669
    %vm710 = vcmp.eq.f32.partialorder %v709, 8.507059e+37
    %v711 = vand.u32 %v669, 2147483648
    %v712 = vor.u32 1.1754944e-38, %v711
    %v713 = vsel %vm710, %v712, %v708
    %v714 = vmul.f32 1.0, %v713
    %v715 = vtanh.pop %v656
    %v716 = vmul.f32 %v699, 0.0
    %v717 = vmul.f32 %v684, %v715
    %v718 = vadd.f32 %v716, %v717
    %v719 = vtanh.pop %v718
    %v720 = vmul.f32 %v714, %v719
    %721 = vmatpush.msra.mxu0 %v570
    %722 = vmatpush.msra.mxu0 %v566
    %723 = vmatpush.msra.mxu0 %v562
    %724 = vmatpush.msra.mxu0 %v558
    %725 = vmatpush.msra.mxu0 %v554
    %726 = vmatpush.msra.mxu0 %v550
    %727 = vmatpush.msra.mxu0 %v546
    %728 = vmatpush.msra.mxu0 %v542
    %729 = vmatpush.msra.mxu0 %v538
    %730 = vmatpush.msra.mxu0 %v534
    %731 = vmatpush.msra.mxu0 %v530
    %732 = vmatpush.msra.mxu0 %v526
    %733 = vmatpush.msra.mxu0 %v522
    %734 = vmatpush.msra.mxu0 %v518
    %735 = vmatpush.msra.mxu0 %v514
    %736 = vmatpush.msra.mxu0 %v510
    %737 = vmatmul.f32.gmra.mxu0 %v720
    %v738 = vpop.f32.mrf.mxu0
    %v739 = vadd.f32 0.0, %v738
    %740 = vdwg.mxu0
    %741 = vmatpush.msra.mxu0 %v571
    %742 = vmatpush.msra.mxu0 %v567
    %743 = vmatpush.msra.mxu0 %v563
    %744 = vmatpush.msra.mxu0 %v559
    %745 = vmatpush.msra.mxu0 %v555
    %746 = vmatpush.msra.mxu0 %v551
    %747 = vmatpush.msra.mxu0 %v547
    %748 = vmatpush.msra.mxu0 %v543
    %749 = vmatpush.msra.mxu0 %v539
    %750 = vmatpush.msra.mxu0 %v535
    %751 = vmatpush.msra.mxu0 %v531
    %752 = vmatpush.msra.mxu0 %v527
    %753 = vmatpush.msra.mxu0 %v523
    %754 = vmatpush.msra.mxu0 %v519
    %755 = vmatpush.msra.mxu0 %v515
    %756 = vmatpush.msra.mxu0 %v511
    %757 = vmatmul.f32.gmra.mxu0 %v720
    %v758 = vpop.f32.mrf.mxu0
    %v759 = vadd.f32 0.0, %v758
    %760 = vdwg.mxu0
    %761 = vmatpush.msra.mxu0 %v572
    %762 = vmatpush.msra.mxu0 %v568
    %763 = vmatpush.msra.mxu0 %v564
    %764 = vmatpush.msra.mxu0 %v560
    %765 = vmatpush.msra.mxu0 %v556
    %766 = vmatpush.msra.mxu0 %v552
    %767 = vmatpush.msra.mxu0 %v548
    %768 = vmatpush.msra.mxu0 %v544
    %769 = vmatpush.msra.mxu0 %v540
    %770 = vmatpush.msra.mxu0 %v536
    %771 = vmatpush.msra.mxu0 %v532
    %772 = vmatpush.msra.mxu0 %v528
    %773 = vmatpush.msra.mxu0 %v524
    %774 = vmatpush.msra.mxu0 %v520
    %775 = vmatpush.msra.mxu0 %v516
    %776 = vmatpush.msra.mxu0 %v512
    %777 = vmatmul.f32.gmra.mxu0 %v720
    %v778 = vpop.f32.mrf.mxu0
    %v779 = vadd.f32 0.0, %v778
    %780 = vdwg.mxu0
    %781 = vmatpush.msra.mxu0 %v573
    %782 = vmatpush.msra.mxu0 %v569
    %783 = vmatpush.msra.mxu0 %v565
    %784 = vmatpush.msra.mxu0 %v561
    %785 = vmatpush.msra.mxu0 %v557
    %786 = vmatpush.msra.mxu0 %v553
    %787 = vmatpush.msra.mxu0 %v549
    %788 = vmatpush.msra.mxu0 %v545
    %789 = vmatpush.msra.mxu0 %v541
    %790 = vmatpush.msra.mxu0 %v537
    %791 = vmatpush.msra.mxu0 %v533
    %792 = vmatpush.msra.mxu0 %v529
    %793 = vmatpush.msra.mxu0 %v525
    %794 = vmatpush.msra.mxu0 %v521
    %795 = vmatpush.msra.mxu0 %v517
    %796 = vmatpush.msra.mxu0 %v513
    %797 = vmatmul.f32.gmra.mxu0 %v720
    %v798 = vpop.f32.mrf.mxu0
    %v799 = vadd.f32 0.0, %v798
    %800 = vdwg.mxu0
    %v805 = vrot.slane %v739, 7
    %v806 = vrot.slane %v759, 7
    %v807 = vrot.slane %v779, 7
    %v808 = vrot.slane %v799, 7
    %v813 = vadd.f32 %v448, %v805
    %v814 = vadd.f32 %v468, %v806
    %v815 = vadd.f32 %v488, %v807
    %v816 = vadd.f32 %v508, %v808
    %v817 = vxor.u32 %v813, 2147483648
    %v818 = vxor.u32 %v814, 2147483648
    %v819 = vxor.u32 %v816, 2147483648
    %v820 = vmul.f32 %v817, 1.442695
    %v821 = vpow.pop %v820
    %v822 = vmul.f32 %v818, 1.442695
    %v823 = vpow.pop %v822
    %v824 = vmul.f32 %v819, 1.442695
    %v825 = vpow.pop %v824
    %v826 = vadd.f32 %v821, 1.0
    %v827 = vadd.f32 %v823, 1.0
    %v828 = vadd.f32 %v825, 1.0
    %v829 = vrcp.pop %v826
    %v830 = vmul.f32 %v826, %v829
    %v831 = vsub.f32 1.0, %v830
    %v832 = vmul.f32 %v829, %v831
    %v833 = vadd.f32 %v829, %v832
    %vm834 = vweird.f32 %v826
    %vm835 = vweird.f32 %v829
    %vm836 = vmor %vm834, %vm835
    %v837 = vsel %vm836, %v829, %v833
    %v838 = vand.u32 2147483647, %v826
    %vm839 = vcmp.eq.f32.partialorder %v838, 8.507059e+37
    %v840 = vand.u32 %v826, 2147483648
    %v841 = vor.u32 1.1754944e-38, %v840
    %v842 = vsel %vm839, %v841, %v837
    %v843 = vmul.f32 1.0, %v842
    %v844 = vrcp.pop %v827
    %v845 = vmul.f32 %v827, %v844
    %v846 = vsub.f32 1.0, %v845
    %v847 = vmul.f32 %v844, %v846
    %v848 = vadd.f32 %v844, %v847
    %vm849 = vweird.f32 %v827
    %vm850 = vweird.f32 %v844
    %vm851 = vmor %vm849, %vm850
    %v852 = vsel %vm851, %v844, %v848
    %v853 = vand.u32 2147483647, %v827
    %vm854 = vcmp.eq.f32.partialorder %v853, 8.507059e+37
    %v855 = vand.u32 %v827, 2147483648
    %v856 = vor.u32 1.1754944e-38, %v855
    %v857 = vsel %vm854, %v856, %v852
    %v858 = vmul.f32 1.0, %v857
    %v859 = vrcp.pop %v828
    %v860 = vmul.f32 %v828, %v859
    %v861 = vsub.f32 1.0, %v860
    %v862 = vmul.f32 %v859, %v861
    %v863 = vadd.f32 %v859, %v862
    %vm864 = vweird.f32 %v828
    %vm865 = vweird.f32 %v859
    %vm866 = vmor %vm864, %vm865
    %v867 = vsel %vm866, %v859, %v863
    %v868 = vand.u32 2147483647, %v828
    %vm869 = vcmp.eq.f32.partialorder %v868, 8.507059e+37
    %v870 = vand.u32 %v828, 2147483648
    %v871 = vor.u32 1.1754944e-38, %v870
    %v872 = vsel %vm869, %v871, %v867
    %v873 = vmul.f32 1.0, %v872
    %v874 = vtanh.pop %v815
    %v876 = vrot.slane %v718, 7
    %v878 = vmul.f32 %v858, %v876
    %v879 = vmul.f32 %v843, %v874
    %v880 = vadd.f32 %v878, %v879
    %v881 = vtanh.pop %v880
    %v882 = vmul.f32 %v873, %v881
    %v884 = vrot.slane %v882, 1
    %886 = vmatpush.msra.mxu0 %v570
    %887 = vmatpush.msra.mxu0 %v566
    %888 = vmatpush.msra.mxu0 %v562
    %889 = vmatpush.msra.mxu0 %v558
    %890 = vmatpush.msra.mxu0 %v554
    %891 = vmatpush.msra.mxu0 %v550
    %892 = vmatpush.msra.mxu0 %v546
    %893 = vmatpush.msra.mxu0 %v542
    %894 = vmatpush.msra.mxu0 %v538
    %895 = vmatpush.msra.mxu0 %v534
    %896 = vmatpush.msra.mxu0 %v530
    %897 = vmatpush.msra.mxu0 %v526
    %898 = vmatpush.msra.mxu0 %v522
    %899 = vmatpush.msra.mxu0 %v518
    %900 = vmatpush.msra.mxu0 %v514
    %901 = vmatpush.msra.mxu0 %v510
    %902 = vmatmul.f32.gmra.mxu0 %v884
    %v903 = vpop.f32.mrf.mxu0
    %v904 = vadd.f32 0.0, %v903
    %905 = vdwg.mxu0
    %906 = vmatpush.msra.mxu0 %v571
    %907 = vmatpush.msra.mxu0 %v567
    %908 = vmatpush.msra.mxu0 %v563
    %909 = vmatpush.msra.mxu0 %v559
    %910 = vmatpush.msra.mxu0 %v555
    %911 = vmatpush.msra.mxu0 %v551
    %912 = vmatpush.msra.mxu0 %v547
    %913 = vmatpush.msra.mxu0 %v543
    %914 = vmatpush.msra.mxu0 %v539
    %915 = vmatpush.msra.mxu0 %v535
    %916 = vmatpush.msra.mxu0 %v531
    %917 = vmatpush.msra.mxu0 %v527
    %918 = vmatpush.msra.mxu0 %v523
    %919 = vmatpush.msra.mxu0 %v519
    %920 = vmatpush.msra.mxu0 %v515
    %921 = vmatpush.msra.mxu0 %v511
    %922 = vmatmul.f32.gmra.mxu0 %v884
    %v923 = vpop.f32.mrf.mxu0
    %v924 = vadd.f32 0.0, %v923
    %925 = vdwg.mxu0
    %926 = vmatpush.msra.mxu0 %v572
    %927 = vmatpush.msra.mxu0 %v568
    %928 = vmatpush.msra.mxu0 %v564
    %929 = vmatpush.msra.mxu0 %v560
    %930 = vmatpush.msra.mxu0 %v556
    %931 = vmatpush.msra.mxu0 %v552
    %932 = vmatpush.msra.mxu0 %v548
    %933 = vmatpush.msra.mxu0 %v544
    %934 = vmatpush.msra.mxu0 %v540
    %935 = vmatpush.msra.mxu0 %v536
    %936 = vmatpush.msra.mxu0 %v532
    %937 = vmatpush.msra.mxu0 %v528
    %938 = vmatpush.msra.mxu0 %v524
    %939 = vmatpush.msra.mxu0 %v520
    %940 = vmatpush.msra.mxu0 %v516
    %941 = vmatpush.msra.mxu0 %v512
    %942 = vmatmul.f32.gmra.mxu0 %v884
    %v943 = vpop.f32.mrf.mxu0
    %v944 = vadd.f32 0.0, %v943
    %945 = vdwg.mxu0
    %946 = vmatpush.msra.mxu0 %v573
    %947 = vmatpush.msra.mxu0 %v569
    %948 = vmatpush.msra.mxu0 %v565
    %949 = vmatpush.msra.mxu0 %v561
    %950 = vmatpush.msra.mxu0 %v557
    %951 = vmatpush.msra.mxu0 %v553
    %952 = vmatpush.msra.mxu0 %v549
    %953 = vmatpush.msra.mxu0 %v545
    %954 = vmatpush.msra.mxu0 %v541
    %955 = vmatpush.msra.mxu0 %v537
    %956 = vmatpush.msra.mxu0 %v533
    %957 = vmatpush.msra.mxu0 %v529
    %958 = vmatpush.msra.mxu0 %v525
    %959 = vmatpush.msra.mxu0 %v521
    %960 = vmatpush.msra.mxu0 %v517
    %961 = vmatpush.msra.mxu0 %v513
    %962 = vmatmul.f32.gmra.mxu0 %v884
    %v963 = vpop.f32.mrf.mxu0
    %v964 = vadd.f32 0.0, %v963
    %965 = vdwg.mxu0
    %v970 = vrot.slane %v904, 6
    %v971 = vrot.slane %v924, 6
    %v972 = vrot.slane %v944, 6
    %v973 = vrot.slane %v964, 6
    %v978 = vadd.f32 %v448, %v970
    %v979 = vadd.f32 %v468, %v971
    %v980 = vadd.f32 %v488, %v972
    %v981 = vadd.f32 %v508, %v973
    %v982 = vxor.u32 %v978, 2147483648
    %v983 = vxor.u32 %v979, 2147483648
    %v984 = vxor.u32 %v981, 2147483648
    %v985 = vmul.f32 %v982, 1.442695
    %v986 = vpow.pop %v985
    %v987 = vmul.f32 %v983, 1.442695
    %v988 = vpow.pop %v987
    %v989 = vmul.f32 %v984, 1.442695
    %v990 = vpow.pop %v989
    %v991 = vadd.f32 %v986, 1.0
    %v992 = vadd.f32 %v988, 1.0
    %v993 = vadd.f32 %v990, 1.0
    %v994 = vrcp.pop %v991
    %v995 = vmul.f32 %v991, %v994
    %v996 = vsub.f32 1.0, %v995
    %v997 = vmul.f32 %v994, %v996
    %v998 = vadd.f32 %v994, %v997
    %vm999 = vweird.f32 %v991
    %vm1000 = vweird.f32 %v994
    %vm1001 = vmor %vm999, %vm1000
    %v1002 = vsel %vm1001, %v994, %v998
    %v1003 = vand.u32 2147483647, %v991
    %vm1004 = vcmp.eq.f32.partialorder %v1003, 8.507059e+37
    %v1005 = vand.u32 %v991, 2147483648
    %v1006 = vor.u32 1.1754944e-38, %v1005
    %v1007 = vsel %vm1004, %v1006, %v1002
    %v1008 = vmul.f32 1.0, %v1007
    %v1009 = vrcp.pop %v992
    %v1010 = vmul.f32 %v992, %v1009
    %v1011 = vsub.f32 1.0, %v1010
    %v1012 = vmul.f32 %v1009, %v1011
    %v1013 = vadd.f32 %v1009, %v1012
    %vm1014 = vweird.f32 %v992
    %vm1015 = vweird.f32 %v1009
    %vm1016 = vmor %vm1014, %vm1015
    %v1017 = vsel %vm1016, %v1009, %v1013
    %v1018 = vand.u32 2147483647, %v992
    %vm1019 = vcmp.eq.f32.partialorder %v1018, 8.507059e+37
    %v1020 = vand.u32 %v992, 2147483648
    %v1021 = vor.u32 1.1754944e-38, %v1020
    %v1022 = vsel %vm1019, %v1021, %v1017
    %v1023 = vmul.f32 1.0, %v1022
    %v1024 = vrcp.pop %v993
    %v1025 = vmul.f32 %v993, %v1024
    %v1026 = vsub.f32 1.0, %v1025
    %v1027 = vmul.f32 %v1024, %v1026
    %v1028 = vadd.f32 %v1024, %v1027
    %vm1029 = vweird.f32 %v993
    %vm1030 = vweird.f32 %v1024
    %vm1031 = vmor %vm1029, %vm1030
    %v1032 = vsel %vm1031, %v1024, %v1028
    %v1033 = vand.u32 2147483647, %v993
    %vm1034 = vcmp.eq.f32.partialorder %v1033, 8.507059e+37
    %v1035 = vand.u32 %v993, 2147483648
    %v1036 = vor.u32 1.1754944e-38, %v1035
    %v1037 = vsel %vm1034, %v1036, %v1032
    %v1038 = vmul.f32 1.0, %v1037
    %v1039 = vtanh.pop %v980
    %v1041 = vrot.slane %v880, 7
    %v1043 = vmul.f32 %v1023, %v1041
    %v1044 = vmul.f32 %v1008, %v1039
    %v1045 = vadd.f32 %v1043, %v1044
    %v1046 = vtanh.pop %v1045
    %v1047 = vmul.f32 %v1038, %v1046
    %v1049 = vrot.slane %v1047, 2
    %1051 = vmatpush.msra.mxu0 %v570
    %1052 = vmatpush.msra.mxu0 %v566
    %1053 = vmatpush.msra.mxu0 %v562
    %1054 = vmatpush.msra.mxu0 %v558
    %1055 = vmatpush.msra.mxu0 %v554
    %1056 = vmatpush.msra.mxu0 %v550
    %1057 = vmatpush.msra.mxu0 %v546
    %1058 = vmatpush.msra.mxu0 %v542
    %1059 = vmatpush.msra.mxu0 %v538
    %1060 = vmatpush.msra.mxu0 %v534
    %1061 = vmatpush.msra.mxu0 %v530
    %1062 = vmatpush.msra.mxu0 %v526
    %1063 = vmatpush.msra.mxu0 %v522
    %1064 = vmatpush.msra.mxu0 %v518
    %1065 = vmatpush.msra.mxu0 %v514
    %1066 = vmatpush.msra.mxu0 %v510
    %1067 = vmatmul.f32.gmra.mxu0 %v1049
    %v1068 = vpop.f32.mrf.mxu0
    %v1069 = vadd.f32 0.0, %v1068
    %1070 = vdwg.mxu0
    %1071 = vmatpush.msra.mxu0 %v571
    %1072 = vmatpush.msra.mxu0 %v567
    %1073 = vmatpush.msra.mxu0 %v563
    %1074 = vmatpush.msra.mxu0 %v559
    %1075 = vmatpush.msra.mxu0 %v555
    %1076 = vmatpush.msra.mxu0 %v551
    %1077 = vmatpush.msra.mxu0 %v547
    %1078 = vmatpush.msra.mxu0 %v543
    %1079 = vmatpush.msra.mxu0 %v539
    %1080 = vmatpush.msra.mxu0 %v535
    %1081 = vmatpush.msra.mxu0 %v531
    %1082 = vmatpush.msra.mxu0 %v527
    %1083 = vmatpush.msra.mxu0 %v523
    %1084 = vmatpush.msra.mxu0 %v519
    %1085 = vmatpush.msra.mxu0 %v515
    %1086 = vmatpush.msra.mxu0 %v511
    %1087 = vmatmul.f32.gmra.mxu0 %v1049
    %v1088 = vpop.f32.mrf.mxu0
    %v1089 = vadd.f32 0.0, %v1088
    %1090 = vdwg.mxu0
    %1091 = vmatpush.msra.mxu0 %v572
    %1092 = vmatpush.msra.mxu0 %v568
    %1093 = vmatpush.msra.mxu0 %v564
    %1094 = vmatpush.msra.mxu0 %v560
    %1095 = vmatpush.msra.mxu0 %v556
    %1096 = vmatpush.msra.mxu0 %v552
    %1097 = vmatpush.msra.mxu0 %v548
    %1098 = vmatpush.msra.mxu0 %v544
    %1099 = vmatpush.msra.mxu0 %v540
    %1100 = vmatpush.msra.mxu0 %v536
    %1101 = vmatpush.msra.mxu0 %v532
    %1102 = vmatpush.msra.mxu0 %v528
    %1103 = vmatpush.msra.mxu0 %v524
    %1104 = vmatpush.msra.mxu0 %v520
    %1105 = vmatpush.msra.mxu0 %v516
    %1106 = vmatpush.msra.mxu0 %v512
    %1107 = vmatmul.f32.gmra.mxu0 %v1049
    %v1108 = vpop.f32.mrf.mxu0
    %v1109 = vadd.f32 0.0, %v1108
    %1110 = vdwg.mxu0
    %1111 = vmatpush.msra.mxu0 %v573
    %1112 = vmatpush.msra.mxu0 %v569
    %1113 = vmatpush.msra.mxu0 %v565
    %1114 = vmatpush.msra.mxu0 %v561
    %1115 = vmatpush.msra.mxu0 %v557
    %1116 = vmatpush.msra.mxu0 %v553
    %1117 = vmatpush.msra.mxu0 %v549
    %1118 = vmatpush.msra.mxu0 %v545
    %1119 = vmatpush.msra.mxu0 %v541
    %1120 = vmatpush.msra.mxu0 %v537
    %1121 = vmatpush.msra.mxu0 %v533
    %1122 = vmatpush.msra.mxu0 %v529
    %1123 = vmatpush.msra.mxu0 %v525
    %1124 = vmatpush.msra.mxu0 %v521
    %1125 = vmatpush.msra.mxu0 %v517
    %1126 = vmatpush.msra.mxu0 %v513
    %1127 = vmatmul.f32.gmra.mxu0 %v1049
    %v1128 = vpop.f32.mrf.mxu0
    %v1129 = vadd.f32 0.0, %v1128
    %1130 = vdwg.mxu0
    %v1135 = vrot.slane %v1069, 5
    %v1136 = vrot.slane %v1089, 5
    %v1137 = vrot.slane %v1109, 5
    %v1138 = vrot.slane %v1129, 5
    %v1143 = vadd.f32 %v448, %v1135
    %v1144 = vadd.f32 %v468, %v1136
    %v1145 = vadd.f32 %v488, %v1137
    %v1146 = vadd.f32 %v508, %v1138
    %v1147 = vxor.u32 %v1143, 2147483648
    %v1148 = vxor.u32 %v1144, 2147483648
    %v1149 = vxor.u32 %v1146, 2147483648
    %v1150 = vmul.f32 %v1147, 1.442695
    %v1151 = vpow.pop %v1150
    %v1152 = vmul.f32 %v1148, 1.442695
    %v1153 = vpow.pop %v1152
    %v1154 = vmul.f32 %v1149, 1.442695
    %v1155 = vpow.pop %v1154
    %v1156 = vadd.f32 %v1151, 1.0
    %v1157 = vadd.f32 %v1153, 1.0
    %v1158 = vadd.f32 %v1155, 1.0
    %v1159 = vrcp.pop %v1156
    %v1160 = vmul.f32 %v1156, %v1159
    %v1161 = vsub.f32 1.0, %v1160
    %v1162 = vmul.f32 %v1159, %v1161
    %v1163 = vadd.f32 %v1159, %v1162
    %vm1164 = vweird.f32 %v1156
    %vm1165 = vweird.f32 %v1159
    %vm1166 = vmor %vm1164, %vm1165
    %v1167 = vsel %vm1166, %v1159, %v1163
    %v1168 = vand.u32 2147483647, %v1156
    %vm1169 = vcmp.eq.f32.partialorder %v1168, 8.507059e+37
    %v1170 = vand.u32 %v1156, 2147483648
    %v1171 = vor.u32 1.1754944e-38, %v1170
    %v1172 = vsel %vm1169, %v1171, %v1167
    %v1173 = vmul.f32 1.0, %v1172
    %v1174 = vrcp.pop %v1157
    %v1175 = vmul.f32 %v1157, %v1174
    %v1176 = vsub.f32 1.0, %v1175
    %v1177 = vmul.f32 %v1174, %v1176
    %v1178 = vadd.f32 %v1174, %v1177
    %vm1179 = vweird.f32 %v1157
    %vm1180 = vweird.f32 %v1174
    %vm1181 = vmor %vm1179, %vm1180
    %v1182 = vsel %vm1181, %v1174, %v1178
    %v1183 = vand.u32 2147483647, %v1157
    %vm1184 = vcmp.eq.f32.partialorder %v1183, 8.507059e+37
    %v1185 = vand.u32 %v1157, 2147483648
    %v1186 = vor.u32 1.1754944e-38, %v1185
    %v1187 = vsel %vm1184, %v1186, %v1182
    %v1188 = vmul.f32 1.0, %v1187
    %v1189 = vrcp.pop %v1158
    %v1190 = vmul.f32 %v1158, %v1189
    %v1191 = vsub.f32 1.0, %v1190
    %v1192 = vmul.f32 %v1189, %v1191
    %v1193 = vadd.f32 %v1189, %v1192
    %vm1194 = vweird.f32 %v1158
    %vm1195 = vweird.f32 %v1189
    %vm1196 = vmor %vm1194, %vm1195
    %v1197 = vsel %vm1196, %v1189, %v1193
    %v1198 = vand.u32 2147483647, %v1158
    %vm1199 = vcmp.eq.f32.partialorder %v1198, 8.507059e+37
    %v1200 = vand.u32 %v1158, 2147483648
    %v1201 = vor.u32 1.1754944e-38, %v1200
    %v1202 = vsel %vm1199, %v1201, %v1197
    %v1203 = vmul.f32 1.0, %v1202
    %v1204 = vtanh.pop %v1145
    %v1206 = vrot.slane %v1045, 7
    %v1208 = vmul.f32 %v1188, %v1206
    %v1209 = vmul.f32 %v1173, %v1204
    %v1210 = vadd.f32 %v1208, %v1209
    %v1211 = vtanh.pop %v1210
    %v1212 = vmul.f32 %v1203, %v1211
    %v1214 = vrot.slane %v1212, 3
    %1216 = vmatpush.msra.mxu0 %v570
    %1217 = vmatpush.msra.mxu0 %v566
    %1218 = vmatpush.msra.mxu0 %v562
    %1219 = vmatpush.msra.mxu0 %v558
    %1220 = vmatpush.msra.mxu0 %v554
    %1221 = vmatpush.msra.mxu0 %v550
    %1222 = vmatpush.msra.mxu0 %v546
    %1223 = vmatpush.msra.mxu0 %v542
    %1224 = vmatpush.msra.mxu0 %v538
    %1225 = vmatpush.msra.mxu0 %v534
    %1226 = vmatpush.msra.mxu0 %v530
    %1227 = vmatpush.msra.mxu0 %v526
    %1228 = vmatpush.msra.mxu0 %v522
    %1229 = vmatpush.msra.mxu0 %v518
    %1230 = vmatpush.msra.mxu0 %v514
    %1231 = vmatpush.msra.mxu0 %v510
    %1232 = vmatmul.f32.gmra.mxu0 %v1214
    %v1233 = vpop.f32.mrf.mxu0
    %v1234 = vadd.f32 0.0, %v1233
    %1235 = vdwg.mxu0
    %1236 = vmatpush.msra.mxu0 %v571
    %1237 = vmatpush.msra.mxu0 %v567
    %1238 = vmatpush.msra.mxu0 %v563
    %1239 = vmatpush.msra.mxu0 %v559
    %1240 = vmatpush.msra.mxu0 %v555
    %1241 = vmatpush.msra.mxu0 %v551
    %1242 = vmatpush.msra.mxu0 %v547
    %1243 = vmatpush.msra.mxu0 %v543
    %1244 = vmatpush.msra.mxu0 %v539
    %1245 = vmatpush.msra.mxu0 %v535
    %1246 = vmatpush.msra.mxu0 %v531
    %1247 = vmatpush.msra.mxu0 %v527
    %1248 = vmatpush.msra.mxu0 %v523
    %1249 = vmatpush.msra.mxu0 %v519
    %1250 = vmatpush.msra.mxu0 %v515
    %1251 = vmatpush.msra.mxu0 %v511
    %1252 = vmatmul.f32.gmra.mxu0 %v1214
    %v1253 = vpop.f32.mrf.mxu0
    %v1254 = vadd.f32 0.0, %v1253
    %1255 = vdwg.mxu0
    %1256 = vmatpush.msra.mxu0 %v572
    %1257 = vmatpush.msra.mxu0 %v568
    %1258 = vmatpush.msra.mxu0 %v564
    %1259 = vmatpush.msra.mxu0 %v560
    %1260 = vmatpush.msra.mxu0 %v556
    %1261 = vmatpush.msra.mxu0 %v552
    %1262 = vmatpush.msra.mxu0 %v548
    %1263 = vmatpush.msra.mxu0 %v544
    %1264 = vmatpush.msra.mxu0 %v540
    %1265 = vmatpush.msra.mxu0 %v536
    %1266 = vmatpush.msra.mxu0 %v532
    %1267 = vmatpush.msra.mxu0 %v528
    %1268 = vmatpush.msra.mxu0 %v524
    %1269 = vmatpush.msra.mxu0 %v520
    %1270 = vmatpush.msra.mxu0 %v516
    %1271 = vmatpush.msra.mxu0 %v512
    %1272 = vmatmul.f32.gmra.mxu0 %v1214
    %v1273 = vpop.f32.mrf.mxu0
    %v1274 = vadd.f32 0.0, %v1273
    %1275 = vdwg.mxu0
    %1276 = vmatpush.msra.mxu0 %v573
    %1277 = vmatpush.msra.mxu0 %v569
    %1278 = vmatpush.msra.mxu0 %v565
    %1279 = vmatpush.msra.mxu0 %v561
    %1280 = vmatpush.msra.mxu0 %v557
    %1281 = vmatpush.msra.mxu0 %v553
    %1282 = vmatpush.msra.mxu0 %v549
    %1283 = vmatpush.msra.mxu0 %v545
    %1284 = vmatpush.msra.mxu0 %v541
    %1285 = vmatpush.msra.mxu0 %v537
    %1286 = vmatpush.msra.mxu0 %v533
    %1287 = vmatpush.msra.mxu0 %v529
    %1288 = vmatpush.msra.mxu0 %v525
    %1289 = vmatpush.msra.mxu0 %v521
    %1290 = vmatpush.msra.mxu0 %v517
    %1291 = vmatpush.msra.mxu0 %v513
    %1292 = vmatmul.f32.gmra.mxu0 %v1214
    %v1293 = vpop.f32.mrf.mxu0
    %v1294 = vadd.f32 0.0, %v1293
    %1295 = vdwg.mxu0
    %v1300 = vrot.slane %v1234, 4
    %v1301 = vrot.slane %v1254, 4
    %v1302 = vrot.slane %v1274, 4
    %v1303 = vrot.slane %v1294, 4
    %v1308 = vadd.f32 %v448, %v1300
    %v1309 = vadd.f32 %v468, %v1301
    %v1310 = vadd.f32 %v488, %v1302
    %v1311 = vadd.f32 %v508, %v1303
    %v1312 = vxor.u32 %v1308, 2147483648
    %v1313 = vxor.u32 %v1309, 2147483648
    %v1314 = vxor.u32 %v1311, 2147483648
    %v1315 = vmul.f32 %v1312, 1.442695
    %v1316 = vpow.pop %v1315
    %v1317 = vmul.f32 %v1313, 1.442695
    %v1318 = vpow.pop %v1317
    %v1319 = vmul.f32 %v1314, 1.442695
    %v1320 = vpow.pop %v1319
    %v1321 = vadd.f32 %v1316, 1.0
    %v1322 = vadd.f32 %v1318, 1.0
    %v1323 = vadd.f32 %v1320, 1.0
    %v1324 = vrcp.pop %v1321
    %v1325 = vmul.f32 %v1321, %v1324
    %v1326 = vsub.f32 1.0, %v1325
    %v1327 = vmul.f32 %v1324, %v1326
    %v1328 = vadd.f32 %v1324, %v1327
    %vm1329 = vweird.f32 %v1321
    %vm1330 = vweird.f32 %v1324
    %vm1331 = vmor %vm1329, %vm1330
    %v1332 = vsel %vm1331, %v1324, %v1328
    %v1333 = vand.u32 2147483647, %v1321
    %vm1334 = vcmp.eq.f32.partialorder %v1333, 8.507059e+37
    %v1335 = vand.u32 %v1321, 2147483648
    %v1336 = vor.u32 1.1754944e-38, %v1335
    %v1337 = vsel %vm1334, %v1336, %v1332
    %v1338 = vmul.f32 1.0, %v1337
    %v1339 = vrcp.pop %v1322
    %v1340 = vmul.f32 %v1322, %v1339
    %v1341 = vsub.f32 1.0, %v1340
    %v1342 = vmul.f32 %v1339, %v1341
    %v1343 = vadd.f32 %v1339, %v1342
    %vm1344 = vweird.f32 %v1322
    %vm1345 = vweird.f32 %v1339
    %vm1346 = vmor %vm1344, %vm1345
    %v1347 = vsel %vm1346, %v1339, %v1343
    %v1348 = vand.u32 2147483647, %v1322
    %vm1349 = vcmp.eq.f32.partialorder %v1348, 8.507059e+37
    %v1350 = vand.u32 %v1322, 2147483648
    %v1351 = vor.u32 1.1754944e-38, %v1350
    %v1352 = vsel %vm1349, %v1351, %v1347
    %v1353 = vmul.f32 1.0, %v1352
    %v1354 = vrcp.pop %v1323
    %v1355 = vmul.f32 %v1323, %v1354
    %v1356 = vsub.f32 1.0, %v1355
    %v1357 = vmul.f32 %v1354, %v1356
    %v1358 = vadd.f32 %v1354, %v1357
    %vm1359 = vweird.f32 %v1323
    %vm1360 = vweird.f32 %v1354
    %vm1361 = vmor %vm1359, %vm1360
    %v1362 = vsel %vm1361, %v1354, %v1358
    %v1363 = vand.u32 2147483647, %v1323
    %vm1364 = vcmp.eq.f32.partialorder %v1363, 8.507059e+37
    %v1365 = vand.u32 %v1323, 2147483648
    %v1366 = vor.u32 1.1754944e-38, %v1365
    %v1367 = vsel %vm1364, %v1366, %v1362
    %v1368 = vmul.f32 1.0, %v1367
    %v1369 = vtanh.pop %v1310
    %v1371 = vrot.slane %v1210, 7
    %v1373 = vmul.f32 %v1353, %v1371
    %v1374 = vmul.f32 %v1338, %v1369
    %v1375 = vadd.f32 %v1373, %v1374
    %v1376 = vtanh.pop %v1375
    %v1377 = vmul.f32 %v1368, %v1376
    %v1379 = vrot.slane %v1377, 4
    %1381 = vmatpush.msra.mxu0 %v570
    %1382 = vmatpush.msra.mxu0 %v566
    %1383 = vmatpush.msra.mxu0 %v562
    %1384 = vmatpush.msra.mxu0 %v558
    %1385 = vmatpush.msra.mxu0 %v554
    %1386 = vmatpush.msra.mxu0 %v550
    %1387 = vmatpush.msra.mxu0 %v546
    %1388 = vmatpush.msra.mxu0 %v542
    %1389 = vmatpush.msra.mxu0 %v538
    %1390 = vmatpush.msra.mxu0 %v534
    %1391 = vmatpush.msra.mxu0 %v530
    %1392 = vmatpush.msra.mxu0 %v526
    %1393 = vmatpush.msra.mxu0 %v522
    %1394 = vmatpush.msra.mxu0 %v518
    %1395 = vmatpush.msra.mxu0 %v514
    %1396 = vmatpush.msra.mxu0 %v510
    %1397 = vmatmul.f32.gmra.mxu0 %v1379
    %v1398 = vpop.f32.mrf.mxu0
    %v1399 = vadd.f32 0.0, %v1398
    %1400 = vdwg.mxu0
    %1401 = vmatpush.msra.mxu0 %v571
    %1402 = vmatpush.msra.mxu0 %v567
    %1403 = vmatpush.msra.mxu0 %v563
    %1404 = vmatpush.msra.mxu0 %v559
    %1405 = vmatpush.msra.mxu0 %v555
    %1406 = vmatpush.msra.mxu0 %v551
    %1407 = vmatpush.msra.mxu0 %v547
    %1408 = vmatpush.msra.mxu0 %v543
    %1409 = vmatpush.msra.mxu0 %v539
    %1410 = vmatpush.msra.mxu0 %v535
    %1411 = vmatpush.msra.mxu0 %v531
    %1412 = vmatpush.msra.mxu0 %v527
    %1413 = vmatpush.msra.mxu0 %v523
    %1414 = vmatpush.msra.mxu0 %v519
    %1415 = vmatpush.msra.mxu0 %v515
    %1416 = vmatpush.msra.mxu0 %v511
    %1417 = vmatmul.f32.gmra.mxu0 %v1379
    %v1418 = vpop.f32.mrf.mxu0
    %v1419 = vadd.f32 0.0, %v1418
    %1420 = vdwg.mxu0
    %1421 = vmatpush.msra.mxu0 %v572
    %1422 = vmatpush.msra.mxu0 %v568
    %1423 = vmatpush.msra.mxu0 %v564
    %1424 = vmatpush.msra.mxu0 %v560
    %1425 = vmatpush.msra.mxu0 %v556
    %1426 = vmatpush.msra.mxu0 %v552
    %1427 = vmatpush.msra.mxu0 %v548
    %1428 = vmatpush.msra.mxu0 %v544
    %1429 = vmatpush.msra.mxu0 %v540
    %1430 = vmatpush.msra.mxu0 %v536
    %1431 = vmatpush.msra.mxu0 %v532
    %1432 = vmatpush.msra.mxu0 %v528
    %1433 = vmatpush.msra.mxu0 %v524
    %1434 = vmatpush.msra.mxu0 %v520
    %1435 = vmatpush.msra.mxu0 %v516
    %1436 = vmatpush.msra.mxu0 %v512
    %1437 = vmatmul.f32.gmra.mxu0 %v1379
    %v1438 = vpop.f32.mrf.mxu0
    %v1439 = vadd.f32 0.0, %v1438
    %1440 = vdwg.mxu0
    %1441 = vmatpush.msra.mxu0 %v573
    %1442 = vmatpush.msra.mxu0 %v569
    %1443 = vmatpush.msra.mxu0 %v565
    %1444 = vmatpush.msra.mxu0 %v561
    %1445 = vmatpush.msra.mxu0 %v557
    %1446 = vmatpush.msra.mxu0 %v553
    %1447 = vmatpush.msra.mxu0 %v549
    %1448 = vmatpush.msra.mxu0 %v545
    %1449 = vmatpush.msra.mxu0 %v541
    %1450 = vmatpush.msra.mxu0 %v537
    %1451 = vmatpush.msra.mxu0 %v533
    %1452 = vmatpush.msra.mxu0 %v529
    %1453 = vmatpush.msra.mxu0 %v525
    %1454 = vmatpush.msra.mxu0 %v521
    %1455 = vmatpush.msra.mxu0 %v517
    %1456 = vmatpush.msra.mxu0 %v513
    %1457 = vmatmul.f32.gmra.mxu0 %v1379
    %v1458 = vpop.f32.mrf.mxu0
    %v1459 = vadd.f32 0.0, %v1458
    %1460 = vdwg.mxu0
    %v1465 = vrot.slane %v1399, 3
    %v1466 = vrot.slane %v1419, 3
    %v1467 = vrot.slane %v1439, 3
    %v1468 = vrot.slane %v1459, 3
    %v1473 = vadd.f32 %v448, %v1465
    %v1474 = vadd.f32 %v468, %v1466
    %v1475 = vadd.f32 %v488, %v1467
    %v1476 = vadd.f32 %v508, %v1468
    %v1477 = vxor.u32 %v1473, 2147483648
    %v1478 = vxor.u32 %v1474, 2147483648
    %v1479 = vxor.u32 %v1476, 2147483648
    %v1480 = vmul.f32 %v1477, 1.442695
    %v1481 = vpow.pop %v1480
    %v1482 = vmul.f32 %v1478, 1.442695
    %v1483 = vpow.pop %v1482
    %v1484 = vmul.f32 %v1479, 1.442695
    %v1485 = vpow.pop %v1484
    %v1486 = vadd.f32 %v1481, 1.0
    %v1487 = vadd.f32 %v1483, 1.0
    %v1488 = vadd.f32 %v1485, 1.0
    %v1489 = vrcp.pop %v1486
    %v1490 = vmul.f32 %v1486, %v1489
    %v1491 = vsub.f32 1.0, %v1490
    %v1492 = vmul.f32 %v1489, %v1491
    %v1493 = vadd.f32 %v1489, %v1492
    %vm1494 = vweird.f32 %v1486
    %vm1495 = vweird.f32 %v1489
    %vm1496 = vmor %vm1494, %vm1495
    %v1497 = vsel %vm1496, %v1489, %v1493
    %v1498 = vand.u32 2147483647, %v1486
    %vm1499 = vcmp.eq.f32.partialorder %v1498, 8.507059e+37
    %v1500 = vand.u32 %v1486, 2147483648
    %v1501 = vor.u32 1.1754944e-38, %v1500
    %v1502 = vsel %vm1499, %v1501, %v1497
    %v1503 = vmul.f32 1.0, %v1502
    %v1504 = vrcp.pop %v1487
    %v1505 = vmul.f32 %v1487, %v1504
    %v1506 = vsub.f32 1.0, %v1505
    %v1507 = vmul.f32 %v1504, %v1506
    %v1508 = vadd.f32 %v1504, %v1507
    %vm1509 = vweird.f32 %v1487
    %vm1510 = vweird.f32 %v1504
    %vm1511 = vmor %vm1509, %vm1510
    %v1512 = vsel %vm1511, %v1504, %v1508
    %v1513 = vand.u32 2147483647, %v1487
    %vm1514 = vcmp.eq.f32.partialorder %v1513, 8.507059e+37
    %v1515 = vand.u32 %v1487, 2147483648
    %v1516 = vor.u32 1.1754944e-38, %v1515
    %v1517 = vsel %vm1514, %v1516, %v1512
    %v1518 = vmul.f32 1.0, %v1517
    %v1519 = vrcp.pop %v1488
    %v1520 = vmul.f32 %v1488, %v1519
    %v1521 = vsub.f32 1.0, %v1520
    %v1522 = vmul.f32 %v1519, %v1521
    %v1523 = vadd.f32 %v1519, %v1522
    %vm1524 = vweird.f32 %v1488
    %vm1525 = vweird.f32 %v1519
    %vm1526 = vmor %vm1524, %vm1525
    %v1527 = vsel %vm1526, %v1519, %v1523
    %v1528 = vand.u32 2147483647, %v1488
    %vm1529 = vcmp.eq.f32.partialorder %v1528, 8.507059e+37
    %v1530 = vand.u32 %v1488, 2147483648
    %v1531 = vor.u32 1.1754944e-38, %v1530
    %v1532 = vsel %vm1529, %v1531, %v1527
    %v1533 = vmul.f32 1.0, %v1532
    %v1534 = vtanh.pop %v1475
    %v1536 = vrot.slane %v1375, 7
    %v1538 = vmul.f32 %v1518, %v1536
    %v1539 = vmul.f32 %v1503, %v1534
    %v1540 = vadd.f32 %v1538, %v1539
    %v1541 = vtanh.pop %v1540
    %v1542 = vmul.f32 %v1533, %v1541
    %v1544 = vrot.slane %v1542, 5
    %1546 = vmatpush.msra.mxu0 %v570
    %1547 = vmatpush.msra.mxu0 %v566
    %1548 = vmatpush.msra.mxu0 %v562
    %1549 = vmatpush.msra.mxu0 %v558
    %1550 = vmatpush.msra.mxu0 %v554
    %1551 = vmatpush.msra.mxu0 %v550
    %1552 = vmatpush.msra.mxu0 %v546
    %1553 = vmatpush.msra.mxu0 %v542
    %1554 = vmatpush.msra.mxu0 %v538
    %1555 = vmatpush.msra.mxu0 %v534
    %1556 = vmatpush.msra.mxu0 %v530
    %1557 = vmatpush.msra.mxu0 %v526
    %1558 = vmatpush.msra.mxu0 %v522
    %1559 = vmatpush.msra.mxu0 %v518
    %1560 = vmatpush.msra.mxu0 %v514
    %1561 = vmatpush.msra.mxu0 %v510
    %1562 = vmatmul.f32.gmra.mxu0 %v1544
    %v1563 = vpop.f32.mrf.mxu0
    %v1564 = vadd.f32 0.0, %v1563
    %1565 = vdwg.mxu0
    %1566 = vmatpush.msra.mxu0 %v571
    %1567 = vmatpush.msra.mxu0 %v567
    %1568 = vmatpush.msra.mxu0 %v563
    %1569 = vmatpush.msra.mxu0 %v559
    %1570 = vmatpush.msra.mxu0 %v555
    %1571 = vmatpush.msra.mxu0 %v551
    %1572 = vmatpush.msra.mxu0 %v547
    %1573 = vmatpush.msra.mxu0 %v543
    %1574 = vmatpush.msra.mxu0 %v539
    %1575 = vmatpush.msra.mxu0 %v535
    %1576 = vmatpush.msra.mxu0 %v531
    %1577 = vmatpush.msra.mxu0 %v527
    %1578 = vmatpush.msra.mxu0 %v523
    %1579 = vmatpush.msra.mxu0 %v519
    %1580 = vmatpush.msra.mxu0 %v515
    %1581 = vmatpush.msra.mxu0 %v511
    %1582 = vmatmul.f32.gmra.mxu0 %v1544
    %v1583 = vpop.f32.mrf.mxu0
    %v1584 = vadd.f32 0.0, %v1583
    %1585 = vdwg.mxu0
    %1586 = vmatpush.msra.mxu0 %v572
    %1587 = vmatpush.msra.mxu0 %v568
    %1588 = vmatpush.msra.mxu0 %v564
    %1589 = vmatpush.msra.mxu0 %v560
    %1590 = vmatpush.msra.mxu0 %v556
    %1591 = vmatpush.msra.mxu0 %v552
    %1592 = vmatpush.msra.mxu0 %v548
    %1593 = vmatpush.msra.mxu0 %v544
    %1594 = vmatpush.msra.mxu0 %v540
    %1595 = vmatpush.msra.mxu0 %v536
    %1596 = vmatpush.msra.mxu0 %v532
    %1597 = vmatpush.msra.mxu0 %v528
    %1598 = vmatpush.msra.mxu0 %v524
    %1599 = vmatpush.msra.mxu0 %v520
    %1600 = vmatpush.msra.mxu0 %v516
    %1601 = vmatpush.msra.mxu0 %v512
    %1602 = vmatmul.f32.gmra.mxu0 %v1544
    %v1603 = vpop.f32.mrf.mxu0
    %v1604 = vadd.f32 0.0, %v1603
    %1605 = vdwg.mxu0
    %1606 = vmatpush.msra.mxu0 %v573
    %1607 = vmatpush.msra.mxu0 %v569
    %1608 = vmatpush.msra.mxu0 %v565
    %1609 = vmatpush.msra.mxu0 %v561
    %1610 = vmatpush.msra.mxu0 %v557
    %1611 = vmatpush.msra.mxu0 %v553
    %1612 = vmatpush.msra.mxu0 %v549
    %1613 = vmatpush.msra.mxu0 %v545
    %1614 = vmatpush.msra.mxu0 %v541
    %1615 = vmatpush.msra.mxu0 %v537
    %1616 = vmatpush.msra.mxu0 %v533
    %1617 = vmatpush.msra.mxu0 %v529
    %1618 = vmatpush.msra.mxu0 %v525
    %1619 = vmatpush.msra.mxu0 %v521
    %1620 = vmatpush.msra.mxu0 %v517
    %1621 = vmatpush.msra.mxu0 %v513
    %1622 = vmatmul.f32.gmra.mxu0 %v1544
    %v1623 = vpop.f32.mrf.mxu0
    %v1624 = vadd.f32 0.0, %v1623
    %1625 = vdwg.mxu0
    %v1630 = vrot.slane %v1564, 2
    %v1631 = vrot.slane %v1584, 2
    %v1632 = vrot.slane %v1604, 2
    %v1633 = vrot.slane %v1624, 2
    %v1638 = vadd.f32 %v448, %v1630
    %v1639 = vadd.f32 %v468, %v1631
    %v1640 = vadd.f32 %v488, %v1632
    %v1641 = vadd.f32 %v508, %v1633
    %v1642 = vxor.u32 %v1638, 2147483648
    %v1643 = vxor.u32 %v1639, 2147483648
    %v1644 = vxor.u32 %v1641, 2147483648
    %v1645 = vmul.f32 %v1642, 1.442695
    %v1646 = vpow.pop %v1645
    %v1647 = vmul.f32 %v1643, 1.442695
    %v1648 = vpow.pop %v1647
    %v1649 = vmul.f32 %v1644, 1.442695
    %v1650 = vpow.pop %v1649
    %v1651 = vadd.f32 %v1646, 1.0
    %v1652 = vadd.f32 %v1648, 1.0
    %v1653 = vadd.f32 %v1650, 1.0
    %v1654 = vrcp.pop %v1651
    %v1655 = vmul.f32 %v1651, %v1654
    %v1656 = vsub.f32 1.0, %v1655
    %v1657 = vmul.f32 %v1654, %v1656
    %v1658 = vadd.f32 %v1654, %v1657
    %vm1659 = vweird.f32 %v1651
    %vm1660 = vweird.f32 %v1654
    %vm1661 = vmor %vm1659, %vm1660
    %v1662 = vsel %vm1661, %v1654, %v1658
    %v1663 = vand.u32 2147483647, %v1651
    %vm1664 = vcmp.eq.f32.partialorder %v1663, 8.507059e+37
    %v1665 = vand.u32 %v1651, 2147483648
    %v1666 = vor.u32 1.1754944e-38, %v1665
    %v1667 = vsel %vm1664, %v1666, %v1662
    %v1668 = vmul.f32 1.0, %v1667
    %v1669 = vrcp.pop %v1652
    %v1670 = vmul.f32 %v1652, %v1669
    %v1671 = vsub.f32 1.0, %v1670
    %v1672 = vmul.f32 %v1669, %v1671
    %v1673 = vadd.f32 %v1669, %v1672
    %vm1674 = vweird.f32 %v1652
    %vm1675 = vweird.f32 %v1669
    %vm1676 = vmor %vm1674, %vm1675
    %v1677 = vsel %vm1676, %v1669, %v1673
    %v1678 = vand.u32 2147483647, %v1652
    %vm1679 = vcmp.eq.f32.partialorder %v1678, 8.507059e+37
    %v1680 = vand.u32 %v1652, 2147483648
    %v1681 = vor.u32 1.1754944e-38, %v1680
    %v1682 = vsel %vm1679, %v1681, %v1677
    %v1683 = vmul.f32 1.0, %v1682
    %v1684 = vrcp.pop %v1653
    %v1685 = vmul.f32 %v1653, %v1684
    %v1686 = vsub.f32 1.0, %v1685
    %v1687 = vmul.f32 %v1684, %v1686
    %v1688 = vadd.f32 %v1684, %v1687
    %vm1689 = vweird.f32 %v1653
    %vm1690 = vweird.f32 %v1684
    %vm1691 = vmor %vm1689, %vm1690
    %v1692 = vsel %vm1691, %v1684, %v1688
    %v1693 = vand.u32 2147483647, %v1653
    %vm1694 = vcmp.eq.f32.partialorder %v1693, 8.507059e+37
    %v1695 = vand.u32 %v1653, 2147483648
    %v1696 = vor.u32 1.1754944e-38, %v1695
    %v1697 = vsel %vm1694, %v1696, %v1692
    %v1698 = vmul.f32 1.0, %v1697
    %v1699 = vtanh.pop %v1640
    %v1701 = vrot.slane %v1540, 7
    %v1703 = vmul.f32 %v1683, %v1701
    %v1704 = vmul.f32 %v1668, %v1699
    %v1705 = vadd.f32 %v1703, %v1704
    %v1706 = vtanh.pop %v1705
    %v1707 = vmul.f32 %v1698, %v1706
    %v1709 = vrot.slane %v1707, 6
    %1711 = vmatpush.msra.mxu0 %v570
    %1712 = vmatpush.msra.mxu0 %v566
    %1713 = vmatpush.msra.mxu0 %v562
    %1714 = vmatpush.msra.mxu0 %v558
    %1715 = vmatpush.msra.mxu0 %v554
    %1716 = vmatpush.msra.mxu0 %v550
    %1717 = vmatpush.msra.mxu0 %v546
    %1718 = vmatpush.msra.mxu0 %v542
    %1719 = vmatpush.msra.mxu0 %v538
    %1720 = vmatpush.msra.mxu0 %v534
    %1721 = vmatpush.msra.mxu0 %v530
    %1722 = vmatpush.msra.mxu0 %v526
    %1723 = vmatpush.msra.mxu0 %v522
    %1724 = vmatpush.msra.mxu0 %v518
    %1725 = vmatpush.msra.mxu0 %v514
    %1726 = vmatpush.msra.mxu0 %v510
    %1727 = vmatmul.f32.gmra.mxu0 %v1709
    %v1728 = vpop.f32.mrf.mxu0
    %v1729 = vadd.f32 0.0, %v1728
    %1730 = vdwg.mxu0
    %1731 = vmatpush.msra.mxu0 %v571
    %1732 = vmatpush.msra.mxu0 %v567
    %1733 = vmatpush.msra.mxu0 %v563
    %1734 = vmatpush.msra.mxu0 %v559
    %1735 = vmatpush.msra.mxu0 %v555
    %1736 = vmatpush.msra.mxu0 %v551
    %1737 = vmatpush.msra.mxu0 %v547
    %1738 = vmatpush.msra.mxu0 %v543
    %1739 = vmatpush.msra.mxu0 %v539
    %1740 = vmatpush.msra.mxu0 %v535
    %1741 = vmatpush.msra.mxu0 %v531
    %1742 = vmatpush.msra.mxu0 %v527
    %1743 = vmatpush.msra.mxu0 %v523
    %1744 = vmatpush.msra.mxu0 %v519
    %1745 = vmatpush.msra.mxu0 %v515
    %1746 = vmatpush.msra.mxu0 %v511
    %1747 = vmatmul.f32.gmra.mxu0 %v1709
    %v1748 = vpop.f32.mrf.mxu0
    %v1749 = vadd.f32 0.0, %v1748
    %1750 = vdwg.mxu0
    %1751 = vmatpush.msra.mxu0 %v572
    %1752 = vmatpush.msra.mxu0 %v568
    %1753 = vmatpush.msra.mxu0 %v564
    %1754 = vmatpush.msra.mxu0 %v560
    %1755 = vmatpush.msra.mxu0 %v556
    %1756 = vmatpush.msra.mxu0 %v552
    %1757 = vmatpush.msra.mxu0 %v548
    %1758 = vmatpush.msra.mxu0 %v544
    %1759 = vmatpush.msra.mxu0 %v540
    %1760 = vmatpush.msra.mxu0 %v536
    %1761 = vmatpush.msra.mxu0 %v532
    %1762 = vmatpush.msra.mxu0 %v528
    %1763 = vmatpush.msra.mxu0 %v524
    %1764 = vmatpush.msra.mxu0 %v520
    %1765 = vmatpush.msra.mxu0 %v516
    %1766 = vmatpush.msra.mxu0 %v512
    %1767 = vmatmul.f32.gmra.mxu0 %v1709
    %v1768 = vpop.f32.mrf.mxu0
    %v1769 = vadd.f32 0.0, %v1768
    %1770 = vdwg.mxu0
    %1771 = vmatpush.msra.mxu0 %v573
    %1772 = vmatpush.msra.mxu0 %v569
    %1773 = vmatpush.msra.mxu0 %v565
    %1774 = vmatpush.msra.mxu0 %v561
    %1775 = vmatpush.msra.mxu0 %v557
    %1776 = vmatpush.msra.mxu0 %v553
    %1777 = vmatpush.msra.mxu0 %v549
    %1778 = vmatpush.msra.mxu0 %v545
    %1779 = vmatpush.msra.mxu0 %v541
    %1780 = vmatpush.msra.mxu0 %v537
    %1781 = vmatpush.msra.mxu0 %v533
    %1782 = vmatpush.msra.mxu0 %v529
    %1783 = vmatpush.msra.mxu0 %v525
    %1784 = vmatpush.msra.mxu0 %v521
    %1785 = vmatpush.msra.mxu0 %v517
    %1786 = vmatpush.msra.mxu0 %v513
    %1787 = vmatmul.f32.gmra.mxu0 %v1709
    %v1788 = vpop.f32.mrf.mxu0
    %v1789 = vadd.f32 0.0, %v1788
    %1790 = vdwg.mxu0
    %v1795 = vrot.slane %v1729, 1
    %v1796 = vrot.slane %v1749, 1
    %v1797 = vrot.slane %v1769, 1
    %v1798 = vrot.slane %v1789, 1
    %v1803 = vadd.f32 %v448, %v1795
    %v1804 = vadd.f32 %v468, %v1796
    %v1805 = vadd.f32 %v488, %v1797
    %v1806 = vadd.f32 %v508, %v1798
    %v1807 = vxor.u32 %v1803, 2147483648
    %v1808 = vxor.u32 %v1804, 2147483648
    %v1809 = vxor.u32 %v1806, 2147483648
    %v1810 = vmul.f32 %v1807, 1.442695
    %v1811 = vpow.pop %v1810
    %v1812 = vmul.f32 %v1808, 1.442695
    %v1813 = vpow.pop %v1812
    %v1814 = vmul.f32 %v1809, 1.442695
    %v1815 = vpow.pop %v1814
    %v1816 = vadd.f32 %v1811, 1.0
    %v1817 = vadd.f32 %v1813, 1.0
    %v1818 = vadd.f32 %v1815, 1.0
    %v1819 = vrcp.pop %v1816
    %v1820 = vmul.f32 %v1816, %v1819
    %v1821 = vsub.f32 1.0, %v1820
    %v1822 = vmul.f32 %v1819, %v1821
    %v1823 = vadd.f32 %v1819, %v1822
    %vm1824 = vweird.f32 %v1816
    %vm1825 = vweird.f32 %v1819
    %vm1826 = vmor %vm1824, %vm1825
    %v1827 = vsel %vm1826, %v1819, %v1823
    %v1828 = vand.u32 2147483647, %v1816
    %vm1829 = vcmp.eq.f32.partialorder %v1828, 8.507059e+37
    %v1830 = vand.u32 %v1816, 2147483648
    %v1831 = vor.u32 1.1754944e-38, %v1830
    %v1832 = vsel %vm1829, %v1831, %v1827
    %v1833 = vmul.f32 1.0, %v1832
    %v1834 = vrcp.pop %v1817
    %v1835 = vmul.f32 %v1817, %v1834
    %v1836 = vsub.f32 1.0, %v1835
    %v1837 = vmul.f32 %v1834, %v1836
    %v1838 = vadd.f32 %v1834, %v1837
    %vm1839 = vweird.f32 %v1817
    %vm1840 = vweird.f32 %v1834
    %vm1841 = vmor %vm1839, %vm1840
    %v1842 = vsel %vm1841, %v1834, %v1838
    %v1843 = vand.u32 2147483647, %v1817
    %vm1844 = vcmp.eq.f32.partialorder %v1843, 8.507059e+37
    %v1845 = vand.u32 %v1817, 2147483648
    %v1846 = vor.u32 1.1754944e-38, %v1845
    %v1847 = vsel %vm1844, %v1846, %v1842
    %v1848 = vmul.f32 1.0, %v1847
    %v1849 = vrcp.pop %v1818
    %v1850 = vmul.f32 %v1818, %v1849
    %v1851 = vsub.f32 1.0, %v1850
    %v1852 = vmul.f32 %v1849, %v1851
    %v1853 = vadd.f32 %v1849, %v1852
    %vm1854 = vweird.f32 %v1818
    %vm1855 = vweird.f32 %v1849
    %vm1856 = vmor %vm1854, %vm1855
    %v1857 = vsel %vm1856, %v1849, %v1853
    %v1858 = vand.u32 2147483647, %v1818
    %vm1859 = vcmp.eq.f32.partialorder %v1858, 8.507059e+37
    %v1860 = vand.u32 %v1818, 2147483648
    %v1861 = vor.u32 1.1754944e-38, %v1860
    %v1862 = vsel %vm1859, %v1861, %v1857
    %v1863 = vmul.f32 1.0, %v1862
    %v1864 = vtanh.pop %v1805
    %v1866 = vrot.slane %v1705, 7
    %v1868 = vmul.f32 %v1848, %v1866
    %v1869 = vmul.f32 %v1833, %v1864
    %v1870 = vadd.f32 %v1868, %v1869
    %v1871 = vtanh.pop %v1870
    %v1872 = vmul.f32 %v1863, %v1871
    %v1873 = vperm.slane %v392, 0
    %v1874 = vmul.f32 %v363, %v1873
    %v1875 = vperm.slane %v1872, 7
    %v1876 = vmul.f32 %v1874, %v1875
    %v1877 = vmul.f32 %v1876, %v1876
    %vm1878 = vcmask 1041408
    %v1879 = vsel %vm1878, %v1877, 0.0
    %1880 = vadd.xlane.f32.xlu0 %v1879
    %v1881 = vpop.xlane.xlu0 %1880
    %v1882 = vmax.f32 %v1881, 1e-24
    %v1883 = vrsqrt.pop %v1882
    %v1884 = vmul.f32 %v1883, %v1882
    %v1885 = vmul.f32 %v1884, %v1883
    %v1886 = vmul.f32 0.5, %v1885
    %v1887 = vsub.f32 1.5, %v1886
    %v1888 = vmul.f32 %v1883, %v1887
    %vm1889 = vweird.f32 %v1882
    %vm1890 = vweird.f32 %v1883
    %vm1891 = vmor %vm1889, %vm1890
    %v1892 = vsel %vm1891, %v1883, %v1888
    %v1893 = vmul.f32 %v1876, %v1892
    %v1894 = vld [vmem:[#allocation5 + $0x360] sm:$0xff]
    %v1895 = vld [vmem:[#allocation5 + $0x380] sm:$0xff]
    %v1896 = vld [vmem:[#allocation5 + $0x3a0] sm:$0xff]
    %v1897 = vld [vmem:[#allocation5 + $0x3c0] sm:$0xff]
    %v1898 = vld [vmem:[#allocation5 + $0x3e0] sm:$0xff]
    %v1899 = vld [vmem:[#allocation5 + $0x400] sm:$0xff]
    %v1900 = vld [vmem:[#allocation5 + $0x420] sm:$0xff]
    %v1901 = vld [vmem:[#allocation5 + $0x440] sm:$0xff]
    %v1902 = vld [vmem:[#allocation5 + $0x460] sm:$0xff]
    %v1903 = vld [vmem:[#allocation5 + $0x480] sm:$0xff]
    %v1904 = vld [vmem:[#allocation5 + $0x4a0] sm:$0xff]
    %v1905 = vld [vmem:[#allocation5 + $0x4c0] sm:$0xff]
    %v1906 = vld [vmem:[#allocation5 + $0x4e0] sm:$0xff]
    %v1907 = vld [vmem:[#allocation5 + $0x500] sm:$0xff]
    %v1908 = vld [vmem:[#allocation5 + $0x520] sm:$0xff]
    %v1909 = vld [vmem:[#allocation5 + $0x540] sm:$0xff]
    %v1910 = vld [vmem:[#allocation5 + $0x560] ss:$0 sm:$0xff]
    %1911 = vmatpush.msra.mxu0 %v1909
    %1912 = vmatpush.msra.mxu0 %v1908
    %1913 = vmatpush.msra.mxu0 %v1907
    %1914 = vmatpush.msra.mxu0 %v1906
    %1915 = vmatpush.msra.mxu0 %v1905
    %1916 = vmatpush.msra.mxu0 %v1904
    %1917 = vmatpush.msra.mxu0 %v1903
    %1918 = vmatpush.msra.mxu0 %v1902
    %1919 = vmatpush.msra.mxu0 %v1901
    %1920 = vmatpush.msra.mxu0 %v1900
    %1921 = vmatpush.msra.mxu0 %v1899
    %1922 = vmatpush.msra.mxu0 %v1898
    %1923 = vmatpush.msra.mxu0 %v1897
    %1924 = vmatpush.msra.mxu0 %v1896
    %1925 = vmatpush.msra.mxu0 %v1895
    %1926 = vmatpush.msra.mxu0 %v1894
    %1927 = vmatmul.f32.gmra.mxu0 %v1893
    %v1928 = vpop.f32.mrf.mxu0
    %v1929 = vadd.f32 %v1910, %v1928
    %1930 = vdwg.mxu0
    %1931 = vst [vmem:[#allocation7] sm:$0x3] %v1929
    // Predicated region
    $region26: #{describe_module_forward.1} parent=1 // pred_check
      _
    $region27: #{describe_module_forward.1} parent=1 // pred_check_branch
      %1933 = sbr.rel (0) target = $region29
    $region28: #{describe_module_forward.1} parent=1 // pred_region
      %1935 = vsyncadd [#allocation4], 0
      %s1937 = sshll.u32 [#allocation7], 4
      %s1938 = int_to_ptr.vmem [resolvable:$true] %s1937
      %s1939 = sshll.u32 %s4, 4
      %s1940 = int_to_ptr.hbm [resolvable:$true] %s1939
      %1942 = dma.vmem_to_hbm [thread:$0]  %s1938, 32, %s1940, [#allocation4]
    $region29: #{describe_module_forward.1} parent=1 // pred_fallthru
      _
    // Predicated region
    $region30: #{describe_module_forward.1} parent=1 // pred_check
      _
    $region31: #{describe_module_forward.1} parent=1 // pred_check_branch
      %1944 = sbr.rel (0) target = $region33
    $region32: #{describe_module_forward.1} parent=1 // pred_region
      %1946 = dma.done [#allocation4], 32
    $region33: #{describe_module_forward.1} parent=1 // pred_fallthru
      _
    %1947 = vsyncpa [#allocation3], 1
    %1948 = vsyncpa [#allocation6], 1
    %1949 = vsyncpa [#allocation4], 1

</llo_original>
